<compile_context>
chip_gen: v5e
topology: v5e:2x2
jax: 0.10.0
libtpu: 0.0.40
codegen_flags: <defaults>
</compile_context>

<pallas_src>
import numpy as np
import jax
import jax.numpy as jnp
from jax.experimental import pallas as pl
from jax.experimental.pallas import tpu as pltpu


# ----------------------------------------------------------------------------
# Fused Pallas kernel: whole TCN (all residual blocks) for one batch element
# ----------------------------------------------------------------------------
def make_tcn_kernel(T, pad_rows, layer_cfgs, use_skip):
    """Kernel factory.

    layer_cfgs: list of (cin, cout, dilation, K, has_match) - static Python ints/bools.
    pad_rows:   top/bottom zero padding rows in the VMEM scratch (>= max left pad,
                rounded up to a multiple of 8 so the center store is sublane-aligned).
    """

    def kernel(x_ref, *refs):
        xbuf_ref = refs[-1]          # VMEM scratch (T + 2*pad_rows, Cmax) f32
        out_ref = refs[-2]           # (1, T, Cout_final)
        wrefs = refs[:-2]            # per-layer weights/biases

        # Zero the padded scratch once per grid step; the border rows are never
        # written afterwards, so every tap slice sees exact zero padding.
        xbuf_ref[...] = jnp.zeros_like(xbuf_ref)

        def dilated_conv(val, w_ref, b_ref, d, K):
            """'same' dilated conv: val (T,C) f32, w_ref (K,C,Cout) bf16, b_ref (1,Cout) f32."""
            C = val.shape[1]
            L = (d * (K - 1)) // 2                       # PyTorch 'same' left pad
            # Stage the activation into the zero-padded scratch (static, aligned store).
            xbuf_ref[pad_rows:pad_rows + T, 0:C] = val
            acc = None
            for j in range(K):                           # K tiny matmuls, static tap slices
                off = j * d - L
                if off == 0:
                    tap = val.astype(jnp.bfloat16)       # center tap: reuse the live value
                else:
                    s = pad_rows + off
                    tap = xbuf_ref[s:s + T, 0:C].astype(jnp.bfloat16)
                part = jnp.dot(tap, w_ref[j], preferred_element_type=jnp.float32)
                acc = part if acc is None else acc + part
            return acc + b_ref[...]                      # bias in f32

        x = x_ref[0].astype(jnp.float32)                 # (T, Cin0)
        skip = None
        i = 0
        for (cin, cout, d, K, has_match) in layer_cfgs:
            w1, b1, w2, b2 = wrefs[i], wrefs[i + 1], wrefs[i + 2], wrefs[i + 3]
            i += 4
            if has_match:
                wm, bm = wrefs[i], wrefs[i + 1]
                i += 2

            h = jnp.maximum(dilated_conv(x, w1, b1, d, K), 0.0)
            # torch applies the activation twice after conv2; ReLU is idempotent.
            g = jnp.maximum(dilated_conv(h, w2, b2, d, K), 0.0)

            if has_match:
                x2 = jnp.dot(x.astype(jnp.bfloat16), wm[...],
                             preferred_element_type=jnp.float32) + bm[...]
            else:
                x2 = x

            x = jnp.maximum(x2 + g, 0.0)                 # res_act (next layer input)
            skip = g if skip is None else skip + g       # skip sum accumulated in-kernel

        out = skip if use_skip else x
        out_ref[0] = out.astype(out_ref.dtype)

    return kernel


# ----------------------------------------------------------------------------
# TCN forward: one fused pallas_call for the whole stack
# ----------------------------------------------------------------------------
def tcn_forward_pallas(x_bct, params, dilations, *, use_skip_connections=True,
                       return_sequences=False):
    # PyTorch layout (B, C, T) -> kernel layout (B, T, C).
    x = jnp.transpose(x_bct, (0, 2, 1)).astype(jnp.float32)
    B, T, C0 = x.shape

    layer_cfgs = []
    weights = []
    in_specs = [pl.BlockSpec((1, T, C0), lambda b: (b, 0, 0))]     # x

    cin = C0
    cmax = C0
    lmax = 1
    for p, d in zip(params, dilations):
        K, _, cout = p["w1"].shape
        has_match = bool(p["has_match"])
        d = int(d)
        layer_cfgs.append((cin, cout, d, K, has_match))
        lmax = max(lmax, (d * (K - 1)) // 2)
        cmax = max(cmax, cin, cout)

        # Weights in bf16 (MXU operands + half the weight DMA), biases in f32.
        weights += [p["w1"].astype(jnp.bfloat16), p["b1"].astype(jnp.float32),
                    p["w2"].astype(jnp.bfloat16), p["b2"].astype(jnp.float32)]
        in_specs += [pl.BlockSpec((K, cin, cout), lambda b: (0, 0, 0)),
                     pl.BlockSpec((1, cout), lambda b: (0, 0)),
                     pl.BlockSpec((K, cout, cout), lambda b: (0, 0, 0)),
                     pl.BlockSpec((1, cout), lambda b: (0, 0))]
        if has_match:                                    # only DMA the 1x1 conv when it exists
            weights += [p["wm"].astype(jnp.bfloat16), p["bm"].astype(jnp.float32)]
            in_specs += [pl.BlockSpec((cin, cout), lambda b: (0, 0)),
                         pl.BlockSpec((1, cout), lambda b: (0, 0))]
        cin = cout

    cout_final = cin
    pad_rows = max(8, ((lmax + 7) // 8) * 8)             # aligned center store

    kernel = make_tcn_kernel(T, pad_rows, layer_cfgs, use_skip_connections)

    out = pl.pallas_call(
        kernel,
        out_shape=jax.ShapeDtypeStruct((B, T, cout_final), jnp.float32),
        grid=(B,),
        in_specs=in_specs,
        out_specs=pl.BlockSpec((1, T, cout_final), lambda b: (b, 0, 0)),
        scratch_shapes=[pltpu.VMEM((T + 2 * pad_rows, cmax), jnp.float32)],
        compiler_params=pltpu.CompilerParams(dimension_semantics=("parallel",)),
    )(x, *weights)

    if return_sequences:
        return jnp.transpose(out, (0, 2, 1))             # (B, C, T)
    return out[:, -1, :]                                 # (B, C)  == res[..., -1]


# ----------------------------------------------------------------------------
# Deterministic parameter init (synthetic; matches torch Conv1d shapes)
# ----------------------------------------------------------------------------
def init_params(key, input_dim, nb_filters, K, dilations):
    params = []
    cin = input_dim
    for _ in dilations:
        cout = nb_filters
        key, k1, k2, k3, k4, k5, k6 = jax.random.split(key, 7)
        s1 = 1.0 / np.sqrt(cin * K)
        s2 = 1.0 / np.sqrt(cout * K)
        sm = 1.0 / np.sqrt(cin)
        w1 = jax.random.uniform(k1, (K, cin, cout), jnp.float32, -s1, s1)
        b1 = jax.random.uniform(k2, (1, cout), jnp.float32, -s1, s1)
        w2 = jax.random.uniform(k3, (K, cout, cout), jnp.float32, -s2, s2)
        b2 = jax.random.uniform(k4, (1, cout), jnp.float32, -s2, s2)
        has_match = (cin != cout)
        if has_match:
            wm = jax.random.uniform(k5, (cin, cout), jnp.float32, -sm, sm)
            bm = jax.random.uniform(k6, (1, cout), jnp.float32, -sm, sm)
        else:
            wm, bm = None, None
        params.append(dict(w1=w1, b1=b1, w2=w2, b2=b2, wm=wm, bm=bm,
                           has_match=has_match))
        cin = cout
    return params


# ----------------------------------------------------------------------------
# Pure-JAX f32 reference (lax.conv), mirrors the PyTorch module in (B, C, T)
# ----------------------------------------------------------------------------
def _conv1d_same_ref(x_bct, w_kio, b_1c, d):
    K = w_kio.shape[0]
    w_oik = jnp.transpose(w_kio, (2, 1, 0))              # (Cout, Cin, K)
    total = d * (K - 1)
    left = total // 2
    y = jax.lax.conv_general_dilated(
        x_bct, w_oik, window_strides=(1,), padding=[(left, total - left)],
        rhs_dilation=(d,), dimension_numbers=("NCH", "OIH", "NCH"))
    return y + b_1c.reshape(1, -1, 1)


def tcn_forward_ref(x_bct, params, dilations, *, use_skip_connections=True,
                    return_sequences=False):
    x = x_bct
    res = None
    for p, d in zip(params, dilations):
        h = jax.nn.relu(_conv1d_same_ref(x, p["w1"], p["b1"], d))
        g = jax.nn.relu(_conv1d_same_ref(h, p["w2"], p["b2"], d))
        g = jax.nn.relu(g)
        if p["has_match"]:
            x2 = jnp.einsum("bct,co->bot", x, p["wm"]) + p["bm"].reshape(1, -1, 1)
        else:
            x2 = x
        x = jax.nn.relu(x2 + g)
        res = g if res is None else res + g
    if not use_skip_connections:
        res = x
    if not return_sequences:
        res = res[..., -1]
    return res


# ----------------------------------------------------------------------------
if __name__ == "__main__":
    # Small shapes consistent with the module's (B, D, T) convention.
    B, Cin, T = 2, 4, 16
    nb_filters, K = 32, 3
    dilations = (1, 2, 4)        # nb_stacks = 1, padding='same', relu, no dropout/norm

    key = jax.random.PRNGKey(0)
    kx, kp = jax.random.split(key)
    x = jax.random.normal(kx, (B, Cin, T), jnp.float32)   # PyTorch layout (B, D, T)
    params = init_params(kp, Cin, nb_filters, K, dilations)

    out = tcn_forward_pallas(x, params, dilations,
                             use_skip_connections=True, return_sequences=False)
    out = jax.block_until_ready(out)

    ref = tcn_forward_ref(x, params, dilations,
                          use_skip_connections=True, return_sequences=False)
    # bf16 MXU operands (f32 accumulation) -> slightly looser tolerance than pure f32.
    np.testing.assert_allclose(np.asarray(out), np.asarray(ref), rtol=5e-2, atol=1e-2)
    assert out.shape == (B, nb_filters)

    print("KERNEL_OK")
</pallas_src>

<mosaic_0001>
module attributes {stable_mosaic.version = 11 : i64} {
  func.func @kernel(%arg0: i32, %arg1: memref<1x16x4xf32, #tpu.memory_space<vmem>>, %arg2: memref<3x4x32xbf16, #tpu.memory_space<vmem>>, %arg3: memref<1x32xf32, #tpu.memory_space<vmem>>, %arg4: memref<3x32x32xbf16, #tpu.memory_space<vmem>>, %arg5: memref<1x32xf32, #tpu.memory_space<vmem>>, %arg6: memref<4x32xbf16, #tpu.memory_space<vmem>>, %arg7: memref<1x32xf32, #tpu.memory_space<vmem>>, %arg8: memref<3x32x32xbf16, #tpu.memory_space<vmem>>, %arg9: memref<1x32xf32, #tpu.memory_space<vmem>>, %arg10: memref<3x32x32xbf16, #tpu.memory_space<vmem>>, %arg11: memref<1x32xf32, #tpu.memory_space<vmem>>, %arg12: memref<3x32x32xbf16, #tpu.memory_space<vmem>>, %arg13: memref<1x32xf32, #tpu.memory_space<vmem>>, %arg14: memref<3x32x32xbf16, #tpu.memory_space<vmem>>, %arg15: memref<1x32xf32, #tpu.memory_space<vmem>>, %arg16: memref<1x16x32xf32, #tpu.memory_space<vmem>>, %arg17: memref<32x32xf32, #tpu.memory_space<vmem>>) attributes {dimension_semantics = [#tpu.dimension_semantics<parallel>], iteration_bounds = array<i64: 2>, scalar_prefetch = 0 : i64, scratch_operands = 1 : i64, tpu.core_type = #tpu.core_type<tc>, window_params = [{transform_indices = @transform_0, window_bounds = array<i64: 1, 16, 4>}, {pipeline_mode = #tpu.pipeline_mode<synchronous>, transform_indices = @transform_1, window_bounds = array<i64: 3, 4, 32>}, {pipeline_mode = #tpu.pipeline_mode<synchronous>, transform_indices = @transform_2, window_bounds = array<i64: 1, 32>}, {pipeline_mode = #tpu.pipeline_mode<synchronous>, transform_indices = @transform_3, window_bounds = array<i64: 3, 32, 32>}, {pipeline_mode = #tpu.pipeline_mode<synchronous>, transform_indices = @transform_4, window_bounds = array<i64: 1, 32>}, {pipeline_mode = #tpu.pipeline_mode<synchronous>, transform_indices = @transform_5, window_bounds = array<i64: 4, 32>}, {pipeline_mode = #tpu.pipeline_mode<synchronous>, transform_indices = @transform_6, window_bounds = array<i64: 1, 32>}, {pipeline_mode = #tpu.pipeline_mode<synchronous>, transform_indices = @transform_7, window_bounds = array<i64: 3, 32, 32>}, {pipeline_mode = #tpu.pipeline_mode<synchronous>, transform_indices = @transform_8, window_bounds = array<i64: 1, 32>}, {pipeline_mode = #tpu.pipeline_mode<synchronous>, transform_indices = @transform_9, window_bounds = array<i64: 3, 32, 32>}, {pipeline_mode = #tpu.pipeline_mode<synchronous>, transform_indices = @transform_10, window_bounds = array<i64: 1, 32>}, {pipeline_mode = #tpu.pipeline_mode<synchronous>, transform_indices = @transform_11, window_bounds = array<i64: 3, 32, 32>}, {pipeline_mode = #tpu.pipeline_mode<synchronous>, transform_indices = @transform_12, window_bounds = array<i64: 1, 32>}, {pipeline_mode = #tpu.pipeline_mode<synchronous>, transform_indices = @transform_13, window_bounds = array<i64: 3, 32, 32>}, {pipeline_mode = #tpu.pipeline_mode<synchronous>, transform_indices = @transform_14, window_bounds = array<i64: 1, 32>}, {transform_indices = @transform_15, window_bounds = array<i64: 1, 16, 32>}]} {
    %cst = arith.constant 0.000000e+00 : f32
    %0 = vector.broadcast %cst : f32 to vector<32x32xf32>
    %c0 = arith.constant 0 : index
    %c0_0 = arith.constant 0 : index
    %1 = vector.load %arg17[%c0, %c0_0] : memref<32x32xf32, #tpu.memory_space<vmem>>, vector<32x32xf32>
    tpu.vector_store %arg17[%c0, %c0_0], %0 {strides = array<i32>} : memref<32x32xf32, #tpu.memory_space<vmem>>, vector<32x32xf32>,
    %c0_1 = arith.constant 0 : index
    %c0_2 = arith.constant 0 : index
    %c0_3 = arith.constant 0 : index
    %2 = vector.load %arg1[%c0_1, %c0_2, %c0_3] : memref<1x16x4xf32, #tpu.memory_space<vmem>>, vector<1x16x4xf32>
    %3 = vector.shape_cast %2 : vector<1x16x4xf32> to vector<16x4xf32>
    %c8 = arith.constant 8 : index
    %c0_4 = arith.constant 0 : index
    %4 = vector.load %arg17[%c8, %c0_4] : memref<32x32xf32, #tpu.memory_space<vmem>>, vector<16x4xf32>
    tpu.vector_store %arg17[%c8, %c0_4], %3 {strides = array<i32>} : memref<32x32xf32, #tpu.memory_space<vmem>>, vector<16x4xf32>,
    %c7 = arith.constant 7 : index
    %c0_5 = arith.constant 0 : index
    %5 = vector.load %arg17[%c7, %c0_5] : memref<32x32xf32, #tpu.memory_space<vmem>>, vector<16x4xf32>
    %6 = arith.truncf %5 : vector<16x4xf32> to vector<16x4xbf16>
    %c0_6 = arith.constant 0 : index
    %c0_7 = arith.constant 0 : index
    %c0_8 = arith.constant 0 : index
    %7 = vector.load %arg2[%c0_6, %c0_7, %c0_8] : memref<3x4x32xbf16, #tpu.memory_space<vmem>>, vector<1x4x32xbf16>
    %8 = vector.shape_cast %7 : vector<1x4x32xbf16> to vector<4x32xbf16>
    %cst_9 = arith.constant dense<0.000000e+00> : vector<16x32xf32>
    %9 = tpu.matmul %6, %8, %cst_9 {dimension_numbers = #tpu.dot_dimension_numbers<[1], [0], [0], [1], [0, 0, 1, 1], [], []>} : vector<16x4xbf16>, vector<4x32xbf16>, vector<16x32xf32> -> vector<16x32xf32>
    %10 = arith.truncf %3 : vector<16x4xf32> to vector<16x4xbf16>
    %c1 = arith.constant 1 : index
    %c0_10 = arith.constant 0 : index
    %c0_11 = arith.constant 0 : index
    %11 = vector.load %arg2[%c1, %c0_10, %c0_11] : memref<3x4x32xbf16, #tpu.memory_space<vmem>>, vector<1x4x32xbf16>
    %12 = vector.shape_cast %11 : vector<1x4x32xbf16> to vector<4x32xbf16>
    %cst_12 = arith.constant dense<0.000000e+00> : vector<16x32xf32>
    %13 = tpu.matmul %10, %12, %cst_12 {dimension_numbers = #tpu.dot_dimension_numbers<[1], [0], [0], [1], [0, 0, 1, 1], [], []>} : vector<16x4xbf16>, vector<4x32xbf16>, vector<16x32xf32> -> vector<16x32xf32>
    %14 = arith.addf %9, %13 : vector<16x32xf32>
    %c9 = arith.constant 9 : index
    %c0_13 = arith.constant 0 : index
    %15 = vector.load %arg17[%c9, %c0_13] : memref<32x32xf32, #tpu.memory_space<vmem>>, vector<16x4xf32>
    %16 = arith.truncf %15 : vector<16x4xf32> to vector<16x4xbf16>
    %c2 = arith.constant 2 : index
    %c0_14 = arith.constant 0 : index
    %c0_15 = arith.constant 0 : index
    %17 = vector.load %arg2[%c2, %c0_14, %c0_15] : memref<3x4x32xbf16, #tpu.memory_space<vmem>>, vector<1x4x32xbf16>
    %18 = vector.shape_cast %17 : vector<1x4x32xbf16> to vector<4x32xbf16>
    %cst_16 = arith.constant dense<0.000000e+00> : vector<16x32xf32>
    %19 = tpu.matmul %16, %18, %cst_16 {dimension_numbers = #tpu.dot_dimension_numbers<[1], [0], [0], [1], [0, 0, 1, 1], [], []>} : vector<16x4xbf16>, vector<4x32xbf16>, vector<16x32xf32> -> vector<16x32xf32>
    %20 = arith.addf %14, %19 : vector<16x32xf32>
    %c0_17 = arith.constant 0 : index
    %c0_18 = arith.constant 0 : index
    %21 = vector.load %arg3[%c0_17, %c0_18] : memref<1x32xf32, #tpu.memory_space<vmem>>, vector<1x32xf32>
    %22 = vector.broadcast %21 : vector<1x32xf32> to vector<16x32xf32>
    %23 = arith.addf %20, %22 : vector<16x32xf32>
    %cst_19 = arith.constant 0.000000e+00 : f32
    %24 = vector.broadcast %cst_19 : f32 to vector<16x32xf32>
    %25 = arith.maximumf %23, %24 : vector<16x32xf32>
    %c8_20 = arith.constant 8 : index
    %c0_21 = arith.constant 0 : index
    %26 = vector.load %arg17[%c8_20, %c0_21] : memref<32x32xf32, #tpu.memory_space<vmem>>, vector<16x32xf32>
    tpu.vector_store %arg17[%c8_20, %c0_21], %25 {strides = array<i32>} : memref<32x32xf32, #tpu.memory_space<vmem>>, vector<16x32xf32>,
    %c7_22 = arith.constant 7 : index
    %c0_23 = arith.constant 0 : index
    %27 = vector.load %arg17[%c7_22, %c0_23] : memref<32x32xf32, #tpu.memory_space<vmem>>, vector<16x32xf32>
    %28 = arith.truncf %27 : vector<16x32xf32> to vector<16x32xbf16>
    %c0_24 = arith.constant 0 : index
    %c0_25 = arith.constant 0 : index
    %c0_26 = arith.constant 0 : index
    %29 = vector.load %arg4[%c0_24, %c0_25, %c0_26] : memref<3x32x32xbf16, #tpu.memory_space<vmem>>, vector<1x32x32xbf16>
    %30 = vector.shape_cast %29 : vector<1x32x32xbf16> to vector<32x32xbf16>
    %cst_27 = arith.constant dense<0.000000e+00> : vector<16x32xf32>
    %31 = tpu.matmul %28, %30, %cst_27 {dimension_numbers = #tpu.dot_dimension_numbers<[1], [0], [0], [1], [0, 0, 1, 1], [], []>} : vector<16x32xbf16>, vector<32x32xbf16>, vector<16x32xf32> -> vector<16x32xf32>
    %32 = arith.truncf %25 : vector<16x32xf32> to vector<16x32xbf16>
    %c1_28 = arith.constant 1 : index
    %c0_29 = arith.constant 0 : index
    %c0_30 = arith.constant 0 : index
    %33 = vector.load %arg4[%c1_28, %c0_29, %c0_30] : memref<3x32x32xbf16, #tpu.memory_space<vmem>>, vector<1x32x32xbf16>
    %34 = vector.shape_cast %33 : vector<1x32x32xbf16> to vector<32x32xbf16>
    %cst_31 = arith.constant dense<0.000000e+00> : vector<16x32xf32>
    %35 = tpu.matmul %32, %34, %cst_31 {dimension_numbers = #tpu.dot_dimension_numbers<[1], [0], [0], [1], [0, 0, 1, 1], [], []>} : vector<16x32xbf16>, vector<32x32xbf16>, vector<16x32xf32> -> vector<16x32xf32>
    %36 = arith.addf %31, %35 : vector<16x32xf32>
    %c9_32 = arith.constant 9 : index
    %c0_33 = arith.constant 0 : index
    %37 = vector.load %arg17[%c9_32, %c0_33] : memref<32x32xf32, #tpu.memory_space<vmem>>, vector<16x32xf32>
    %38 = arith.truncf %37 : vector<16x32xf32> to vector<16x32xbf16>
    %c2_34 = arith.constant 2 : index
    %c0_35 = arith.constant 0 : index
    %c0_36 = arith.constant 0 : index
    %39 = vector.load %arg4[%c2_34, %c0_35, %c0_36] : memref<3x32x32xbf16, #tpu.memory_space<vmem>>, vector<1x32x32xbf16>
    %40 = vector.shape_cast %39 : vector<1x32x32xbf16> to vector<32x32xbf16>
    %cst_37 = arith.constant dense<0.000000e+00> : vector<16x32xf32>
    %41 = tpu.matmul %38, %40, %cst_37 {dimension_numbers = #tpu.dot_dimension_numbers<[1], [0], [0], [1], [0, 0, 1, 1], [], []>} : vector<16x32xbf16>, vector<32x32xbf16>, vector<16x32xf32> -> vector<16x32xf32>
    %42 = arith.addf %36, %41 : vector<16x32xf32>
    %c0_38 = arith.constant 0 : index
    %c0_39 = arith.constant 0 : index
    %43 = vector.load %arg5[%c0_38, %c0_39] : memref<1x32xf32, #tpu.memory_space<vmem>>, vector<1x32xf32>
    %44 = vector.broadcast %43 : vector<1x32xf32> to vector<16x32xf32>
    %45 = arith.addf %42, %44 : vector<16x32xf32>
    %cst_40 = arith.constant 0.000000e+00 : f32
    %46 = vector.broadcast %cst_40 : f32 to vector<16x32xf32>
    %47 = arith.maximumf %45, %46 : vector<16x32xf32>
    %48 = arith.truncf %3 : vector<16x4xf32> to vector<16x4xbf16>
    %c0_41 = arith.constant 0 : index
    %c0_42 = arith.constant 0 : index
    %49 = vector.load %arg6[%c0_41, %c0_42] : memref<4x32xbf16, #tpu.memory_space<vmem>>, vector<4x32xbf16>
    %cst_43 = arith.constant dense<0.000000e+00> : vector<16x32xf32>
    %50 = tpu.matmul %48, %49, %cst_43 {dimension_numbers = #tpu.dot_dimension_numbers<[1], [0], [0], [1], [0, 0, 1, 1], [], []>} : vector<16x4xbf16>, vector<4x32xbf16>, vector<16x32xf32> -> vector<16x32xf32>
    %c0_44 = arith.constant 0 : index
    %c0_45 = arith.constant 0 : index
    %51 = vector.load %arg7[%c0_44, %c0_45] : memref<1x32xf32, #tpu.memory_space<vmem>>, vector<1x32xf32>
    %52 = vector.broadcast %51 : vector<1x32xf32> to vector<16x32xf32>
    %53 = arith.addf %50, %52 : vector<16x32xf32>
    %54 = arith.addf %53, %47 : vector<16x32xf32>
    %cst_46 = arith.constant 0.000000e+00 : f32
    %55 = vector.broadcast %cst_46 : f32 to vector<16x32xf32>
    %56 = arith.maximumf %54, %55 : vector<16x32xf32>
    %c8_47 = arith.constant 8 : index
    %c0_48 = arith.constant 0 : index
    %57 = vector.load %arg17[%c8_47, %c0_48] : memref<32x32xf32, #tpu.memory_space<vmem>>, vector<16x32xf32>
    tpu.vector_store %arg17[%c8_47, %c0_48], %56 {strides = array<i32>} : memref<32x32xf32, #tpu.memory_space<vmem>>, vector<16x32xf32>,
    %c6 = arith.constant 6 : index
    %c0_49 = arith.constant 0 : index
    %58 = vector.load %arg17[%c6, %c0_49] : memref<32x32xf32, #tpu.memory_space<vmem>>, vector<16x32xf32>
    %59 = arith.truncf %58 : vector<16x32xf32> to vector<16x32xbf16>
    %c0_50 = arith.constant 0 : index
    %c0_51 = arith.constant 0 : index
    %c0_52 = arith.constant 0 : index
    %60 = vector.load %arg8[%c0_50, %c0_51, %c0_52] : memref<3x32x32xbf16, #tpu.memory_space<vmem>>, vector<1x32x32xbf16>
    %61 = vector.shape_cast %60 : vector<1x32x32xbf16> to vector<32x32xbf16>
    %cst_53 = arith.constant dense<0.000000e+00> : vector<16x32xf32>
    %62 = tpu.matmul %59, %61, %cst_53 {dimension_numbers = #tpu.dot_dimension_numbers<[1], [0], [0], [1], [0, 0, 1, 1], [], []>} : vector<16x32xbf16>, vector<32x32xbf16>, vector<16x32xf32> -> vector<16x32xf32>
    %63 = arith.truncf %56 : vector<16x32xf32> to vector<16x32xbf16>
    %c1_54 = arith.constant 1 : index
    %c0_55 = arith.constant 0 : index
    %c0_56 = arith.constant 0 : index
    %64 = vector.load %arg8[%c1_54, %c0_55, %c0_56] : memref<3x32x32xbf16, #tpu.memory_space<vmem>>, vector<1x32x32xbf16>
    %65 = vector.shape_cast %64 : vector<1x32x32xbf16> to vector<32x32xbf16>
    %cst_57 = arith.constant dense<0.000000e+00> : vector<16x32xf32>
    %66 = tpu.matmul %63, %65, %cst_57 {dimension_numbers = #tpu.dot_dimension_numbers<[1], [0], [0], [1], [0, 0, 1, 1], [], []>} : vector<16x32xbf16>, vector<32x32xbf16>, vector<16x32xf32> -> vector<16x32xf32>
    %67 = arith.addf %62, %66 : vector<16x32xf32>
    %c10 = arith.constant 10 : index
    %c0_58 = arith.constant 0 : index
    %68 = vector.load %arg17[%c10, %c0_58] : memref<32x32xf32, #tpu.memory_space<vmem>>, vector<16x32xf32>
    %69 = arith.truncf %68 : vector<16x32xf32> to vector<16x32xbf16>
    %c2_59 = arith.constant 2 : index
    %c0_60 = arith.constant 0 : index
    %c0_61 = arith.constant 0 : index
    %70 = vector.load %arg8[%c2_59, %c0_60, %c0_61] : memref<3x32x32xbf16, #tpu.memory_space<vmem>>, vector<1x32x32xbf16>
    %71 = vector.shape_cast %70 : vector<1x32x32xbf16> to vector<32x32xbf16>
    %cst_62 = arith.constant dense<0.000000e+00> : vector<16x32xf32>
    %72 = tpu.matmul %69, %71, %cst_62 {dimension_numbers = #tpu.dot_dimension_numbers<[1], [0], [0], [1], [0, 0, 1, 1], [], []>} : vector<16x32xbf16>, vector<32x32xbf16>, vector<16x32xf32> -> vector<16x32xf32>
    %73 = arith.addf %67, %72 : vector<16x32xf32>
    %c0_63 = arith.constant 0 : index
    %c0_64 = arith.constant 0 : index
    %74 = vector.load %arg9[%c0_63, %c0_64] : memref<1x32xf32, #tpu.memory_space<vmem>>, vector<1x32xf32>
    %75 = vector.broadcast %74 : vector<1x32xf32> to vector<16x32xf32>
    %76 = arith.addf %73, %75 : vector<16x32xf32>
    %cst_65 = arith.constant 0.000000e+00 : f32
    %77 = vector.broadcast %cst_65 : f32 to vector<16x32xf32>
    %78 = arith.maximumf %76, %77 : vector<16x32xf32>
    %c8_66 = arith.constant 8 : index
    %c0_67 = arith.constant 0 : index
    %79 = vector.load %arg17[%c8_66, %c0_67] : memref<32x32xf32, #tpu.memory_space<vmem>>, vector<16x32xf32>
    tpu.vector_store %arg17[%c8_66, %c0_67], %78 {strides = array<i32>} : memref<32x32xf32, #tpu.memory_space<vmem>>, vector<16x32xf32>,
    %c6_68 = arith.constant 6 : index
    %c0_69 = arith.constant 0 : index
    %80 = vector.load %arg17[%c6_68, %c0_69] : memref<32x32xf32, #tpu.memory_space<vmem>>, vector<16x32xf32>
    %81 = arith.truncf %80 : vector<16x32xf32> to vector<16x32xbf16>
    %c0_70 = arith.constant 0 : index
    %c0_71 = arith.constant 0 : index
    %c0_72 = arith.constant 0 : index
    %82 = vector.load %arg10[%c0_70, %c0_71, %c0_72] : memref<3x32x32xbf16, #tpu.memory_space<vmem>>, vector<1x32x32xbf16>
    %83 = vector.shape_cast %82 : vector<1x32x32xbf16> to vector<32x32xbf16>
    %cst_73 = arith.constant dense<0.000000e+00> : vector<16x32xf32>
    %84 = tpu.matmul %81, %83, %cst_73 {dimension_numbers = #tpu.dot_dimension_numbers<[1], [0], [0], [1], [0, 0, 1, 1], [], []>} : vector<16x32xbf16>, vector<32x32xbf16>, vector<16x32xf32> -> vector<16x32xf32>
    %85 = arith.truncf %78 : vector<16x32xf32> to vector<16x32xbf16>
    %c1_74 = arith.constant 1 : index
    %c0_75 = arith.constant 0 : index
    %c0_76 = arith.constant 0 : index
    %86 = vector.load %arg10[%c1_74, %c0_75, %c0_76] : memref<3x32x32xbf16, #tpu.memory_space<vmem>>, vector<1x32x32xbf16>
    %87 = vector.shape_cast %86 : vector<1x32x32xbf16> to vector<32x32xbf16>
    %cst_77 = arith.constant dense<0.000000e+00> : vector<16x32xf32>
    %88 = tpu.matmul %85, %87, %cst_77 {dimension_numbers = #tpu.dot_dimension_numbers<[1], [0], [0], [1], [0, 0, 1, 1], [], []>} : vector<16x32xbf16>, vector<32x32xbf16>, vector<16x32xf32> -> vector<16x32xf32>
    %89 = arith.addf %84, %88 : vector<16x32xf32>
    %c10_78 = arith.constant 10 : index
    %c0_79 = arith.constant 0 : index
    %90 = vector.load %arg17[%c10_78, %c0_79] : memref<32x32xf32, #tpu.memory_space<vmem>>, vector<16x32xf32>
    %91 = arith.truncf %90 : vector<16x32xf32> to vector<16x32xbf16>
    %c2_80 = arith.constant 2 : index
    %c0_81 = arith.constant 0 : index
    %c0_82 = arith.constant 0 : index
    %92 = vector.load %arg10[%c2_80, %c0_81, %c0_82] : memref<3x32x32xbf16, #tpu.memory_space<vmem>>, vector<1x32x32xbf16>
    %93 = vector.shape_cast %92 : vector<1x32x32xbf16> to vector<32x32xbf16>
    %cst_83 = arith.constant dense<0.000000e+00> : vector<16x32xf32>
    %94 = tpu.matmul %91, %93, %cst_83 {dimension_numbers = #tpu.dot_dimension_numbers<[1], [0], [0], [1], [0, 0, 1, 1], [], []>} : vector<16x32xbf16>, vector<32x32xbf16>, vector<16x32xf32> -> vector<16x32xf32>
    %95 = arith.addf %89, %94 : vector<16x32xf32>
    %c0_84 = arith.constant 0 : index
    %c0_85 = arith.constant 0 : index
    %96 = vector.load %arg11[%c0_84, %c0_85] : memref<1x32xf32, #tpu.memory_space<vmem>>, vector<1x32xf32>
    %97 = vector.broadcast %96 : vector<1x32xf32> to vector<16x32xf32>
    %98 = arith.addf %95, %97 : vector<16x32xf32>
    %cst_86 = arith.constant 0.000000e+00 : f32
    %99 = vector.broadcast %cst_86 : f32 to vector<16x32xf32>
    %100 = arith.maximumf %98, %99 : vector<16x32xf32>
    %101 = arith.addf %56, %100 : vector<16x32xf32>
    %cst_87 = arith.constant 0.000000e+00 : f32
    %102 = vector.broadcast %cst_87 : f32 to vector<16x32xf32>
    %103 = arith.maximumf %101, %102 : vector<16x32xf32>
    %104 = arith.addf %47, %100 : vector<16x32xf32>
    %c8_88 = arith.constant 8 : index
    %c0_89 = arith.constant 0 : index
    %105 = vector.load %arg17[%c8_88, %c0_89] : memref<32x32xf32, #tpu.memory_space<vmem>>, vector<16x32xf32>
    tpu.vector_store %arg17[%c8_88, %c0_89], %103 {strides = array<i32>} : memref<32x32xf32, #tpu.memory_space<vmem>>, vector<16x32xf32>,
    %c4 = arith.constant 4 : index
    %c0_90 = arith.constant 0 : index
    %106 = vector.load %arg17[%c4, %c0_90] : memref<32x32xf32, #tpu.memory_space<vmem>>, vector<16x32xf32>
    %107 = arith.truncf %106 : vector<16x32xf32> to vector<16x32xbf16>
    %c0_91 = arith.constant 0 : index
    %c0_92 = arith.constant 0 : index
    %c0_93 = arith.constant 0 : index
    %108 = vector.load %arg12[%c0_91, %c0_92, %c0_93] : memref<3x32x32xbf16, #tpu.memory_space<vmem>>, vector<1x32x32xbf16>
    %109 = vector.shape_cast %108 : vector<1x32x32xbf16> to vector<32x32xbf16>
    %cst_94 = arith.constant dense<0.000000e+00> : vector<16x32xf32>
    %110 = tpu.matmul %107, %109, %cst_94 {dimension_numbers = #tpu.dot_dimension_numbers<[1], [0], [0], [1], [0, 0, 1, 1], [], []>} : vector<16x32xbf16>, vector<32x32xbf16>, vector<16x32xf32> -> vector<16x32xf32>
    %111 = arith.truncf %103 : vector<16x32xf32> to vector<16x32xbf16>
    %c1_95 = arith.constant 1 : index
    %c0_96 = arith.constant 0 : index
    %c0_97 = arith.constant 0 : index
    %112 = vector.load %arg12[%c1_95, %c0_96, %c0_97] : memref<3x32x32xbf16, #tpu.memory_space<vmem>>, vector<1x32x32xbf16>
    %113 = vector.shape_cast %112 : vector<1x32x32xbf16> to vector<32x32xbf16>
    %cst_98 = arith.constant dense<0.000000e+00> : vector<16x32xf32>
    %114 = tpu.matmul %111, %113, %cst_98 {dimension_numbers = #tpu.dot_dimension_numbers<[1], [0], [0], [1], [0, 0, 1, 1], [], []>} : vector<16x32xbf16>, vector<32x32xbf16>, vector<16x32xf32> -> vector<16x32xf32>
    %115 = arith.addf %110, %114 : vector<16x32xf32>
    %c12 = arith.constant 12 : index
    %c0_99 = arith.constant 0 : index
    %116 = vector.load %arg17[%c12, %c0_99] : memref<32x32xf32, #tpu.memory_space<vmem>>, vector<16x32xf32>
    %117 = arith.truncf %116 : vector<16x32xf32> to vector<16x32xbf16>
    %c2_100 = arith.constant 2 : index
    %c0_101 = arith.constant 0 : index
    %c0_102 = arith.constant 0 : index
    %118 = vector.load %arg12[%c2_100, %c0_101, %c0_102] : memref<3x32x32xbf16, #tpu.memory_space<vmem>>, vector<1x32x32xbf16>
    %119 = vector.shape_cast %118 : vector<1x32x32xbf16> to vector<32x32xbf16>
    %cst_103 = arith.constant dense<0.000000e+00> : vector<16x32xf32>
    %120 = tpu.matmul %117, %119, %cst_103 {dimension_numbers = #tpu.dot_dimension_numbers<[1], [0], [0], [1], [0, 0, 1, 1], [], []>} : vector<16x32xbf16>, vector<32x32xbf16>, vector<16x32xf32> -> vector<16x32xf32>
    %121 = arith.addf %115, %120 : vector<16x32xf32>
    %c0_104 = arith.constant 0 : index
    %c0_105 = arith.constant 0 : index
    %122 = vector.load %arg13[%c0_104, %c0_105] : memref<1x32xf32, #tpu.memory_space<vmem>>, vector<1x32xf32>
    %123 = vector.broadcast %122 : vector<1x32xf32> to vector<16x32xf32>
    %124 = arith.addf %121, %123 : vector<16x32xf32>
    %cst_106 = arith.constant 0.000000e+00 : f32
    %125 = vector.broadcast %cst_106 : f32 to vector<16x32xf32>
    %126 = arith.maximumf %124, %125 : vector<16x32xf32>
    %c8_107 = arith.constant 8 : index
    %c0_108 = arith.constant 0 : index
    %127 = vector.load %arg17[%c8_107, %c0_108] : memref<32x32xf32, #tpu.memory_space<vmem>>, vector<16x32xf32>
    tpu.vector_store %arg17[%c8_107, %c0_108], %126 {strides = array<i32>} : memref<32x32xf32, #tpu.memory_space<vmem>>, vector<16x32xf32>,
    %c4_109 = arith.constant 4 : index
    %c0_110 = arith.constant 0 : index
    %128 = vector.load %arg17[%c4_109, %c0_110] : memref<32x32xf32, #tpu.memory_space<vmem>>, vector<16x32xf32>
    %129 = arith.truncf %128 : vector<16x32xf32> to vector<16x32xbf16>
    %c0_111 = arith.constant 0 : index
    %c0_112 = arith.constant 0 : index
    %c0_113 = arith.constant 0 : index
    %130 = vector.load %arg14[%c0_111, %c0_112, %c0_113] : memref<3x32x32xbf16, #tpu.memory_space<vmem>>, vector<1x32x32xbf16>
    %131 = vector.shape_cast %130 : vector<1x32x32xbf16> to vector<32x32xbf16>
    %cst_114 = arith.constant dense<0.000000e+00> : vector<16x32xf32>
    %132 = tpu.matmul %129, %131, %cst_114 {dimension_numbers = #tpu.dot_dimension_numbers<[1], [0], [0], [1], [0, 0, 1, 1], [], []>} : vector<16x32xbf16>, vector<32x32xbf16>, vector<16x32xf32> -> vector<16x32xf32>
    %133 = arith.truncf %126 : vector<16x32xf32> to vector<16x32xbf16>
    %c1_115 = arith.constant 1 : index
    %c0_116 = arith.constant 0 : index
    %c0_117 = arith.constant 0 : index
    %134 = vector.load %arg14[%c1_115, %c0_116, %c0_117] : memref<3x32x32xbf16, #tpu.memory_space<vmem>>, vector<1x32x32xbf16>
    %135 = vector.shape_cast %134 : vector<1x32x32xbf16> to vector<32x32xbf16>
    %cst_118 = arith.constant dense<0.000000e+00> : vector<16x32xf32>
    %136 = tpu.matmul %133, %135, %cst_118 {dimension_numbers = #tpu.dot_dimension_numbers<[1], [0], [0], [1], [0, 0, 1, 1], [], []>} : vector<16x32xbf16>, vector<32x32xbf16>, vector<16x32xf32> -> vector<16x32xf32>
    %137 = arith.addf %132, %136 : vector<16x32xf32>
    %c12_119 = arith.constant 12 : index
    %c0_120 = arith.constant 0 : index
    %138 = vector.load %arg17[%c12_119, %c0_120] : memref<32x32xf32, #tpu.memory_space<vmem>>, vector<16x32xf32>
    %139 = arith.truncf %138 : vector<16x32xf32> to vector<16x32xbf16>
    %c2_121 = arith.constant 2 : index
    %c0_122 = arith.constant 0 : index
    %c0_123 = arith.constant 0 : index
    %140 = vector.load %arg14[%c2_121, %c0_122, %c0_123] : memref<3x32x32xbf16, #tpu.memory_space<vmem>>, vector<1x32x32xbf16>
    %141 = vector.shape_cast %140 : vector<1x32x32xbf16> to vector<32x32xbf16>
    %cst_124 = arith.constant dense<0.000000e+00> : vector<16x32xf32>
    %142 = tpu.matmul %139, %141, %cst_124 {dimension_numbers = #tpu.dot_dimension_numbers<[1], [0], [0], [1], [0, 0, 1, 1], [], []>} : vector<16x32xbf16>, vector<32x32xbf16>, vector<16x32xf32> -> vector<16x32xf32>
    %143 = arith.addf %137, %142 : vector<16x32xf32>
    %c0_125 = arith.constant 0 : index
    %c0_126 = arith.constant 0 : index
    %144 = vector.load %arg15[%c0_125, %c0_126] : memref<1x32xf32, #tpu.memory_space<vmem>>, vector<1x32xf32>
    %145 = vector.broadcast %144 : vector<1x32xf32> to vector<16x32xf32>
    %146 = arith.addf %143, %145 : vector<16x32xf32>
    %cst_127 = arith.constant 0.000000e+00 : f32
    %147 = vector.broadcast %cst_127 : f32 to vector<16x32xf32>
    %148 = arith.maximumf %146, %147 : vector<16x32xf32>
    %149 = arith.addf %104, %148 : vector<16x32xf32>
    %c0_128 = arith.constant 0 : index
    %c0_129 = arith.constant 0 : index
    %c0_130 = arith.constant 0 : index
    %150 = vector.load %arg16[%c0_128, %c0_129, %c0_130] : memref<1x16x32xf32, #tpu.memory_space<vmem>>, vector<1x16x32xf32>
    %151 = vector.shape_cast %150 : vector<1x16x32xf32> to vector<16x32xf32>
    %152 = vector.shape_cast %149 : vector<16x32xf32> to vector<1x16x32xf32>
    tpu.vector_store %arg16[%c0_128, %c0_129, %c0_130], %152 {strides = array<i32>} : memref<1x16x32xf32, #tpu.memory_space<vmem>>, vector<1x16x32xf32>,
    return
  }
  func.func @transform_0(%arg0: i32) -> (i32, i32, i32) {
    %c0_i32 = arith.constant 0 : i32
    %c0_i32_0 = arith.constant 0 : i32
    %c0_i32_1 = arith.constant 0 : i32
    return %arg0, %c0_i32, %c0_i32_0 : i32, i32, i32
  }
  func.func @transform_1(%arg0: i32) -> (i32, i32, i32) {
    %c0_i32 = arith.constant 0 : i32
    %c0_i32_0 = arith.constant 0 : i32
    %c0_i32_1 = arith.constant 0 : i32
    %c0_i32_2 = arith.constant 0 : i32
    return %c0_i32, %c0_i32_0, %c0_i32_1 : i32, i32, i32
  }
  func.func @transform_2(%arg0: i32) -> (i32, i32) {
    %c0_i32 = arith.constant 0 : i32
    %c0_i32_0 = arith.constant 0 : i32
    %c0_i32_1 = arith.constant 0 : i32
    return %c0_i32, %c0_i32_0 : i32, i32
  }
  func.func @transform_3(%arg0: i32) -> (i32, i32, i32) {
    %c0_i32 = arith.constant 0 : i32
    %c0_i32_0 = arith.constant 0 : i32
    %c0_i32_1 = arith.constant 0 : i32
    %c0_i32_2 = arith.constant 0 : i32
    return %c0_i32, %c0_i32_0, %c0_i32_1 : i32, i32, i32
  }
  func.func @transform_4(%arg0: i32) -> (i32, i32) {
    %c0_i32 = arith.constant 0 : i32
    %c0_i32_0 = arith.constant 0 : i32
    %c0_i32_1 = arith.constant 0 : i32
    return %c0_i32, %c0_i32_0 : i32, i32
  }
  func.func @transform_5(%arg0: i32) -> (i32, i32) {
    %c0_i32 = arith.constant 0 : i32
    %c0_i32_0 = arith.constant 0 : i32
    %c0_i32_1 = arith.constant 0 : i32
    return %c0_i32, %c0_i32_0 : i32, i32
  }
  func.func @transform_6(%arg0: i32) -> (i32, i32) {
    %c0_i32 = arith.constant 0 : i32
    %c0_i32_0 = arith.constant 0 : i32
    %c0_i32_1 = arith.constant 0 : i32
    return %c0_i32, %c0_i32_0 : i32, i32
  }
  func.func @transform_7(%arg0: i32) -> (i32, i32, i32) {
    %c0_i32 = arith.constant 0 : i32
    %c0_i32_0 = arith.constant 0 : i32
    %c0_i32_1 = arith.constant 0 : i32
    %c0_i32_2 = arith.constant 0 : i32
    return %c0_i32, %c0_i32_0, %c0_i32_1 : i32, i32, i32
  }
  func.func @transform_8(%arg0: i32) -> (i32, i32) {
    %c0_i32 = arith.constant 0 : i32
    %c0_i32_0 = arith.constant 0 : i32
    %c0_i32_1 = arith.constant 0 : i32
    return %c0_i32, %c0_i32_0 : i32, i32
  }
  func.func @transform_9(%arg0: i32) -> (i32, i32, i32) {
    %c0_i32 = arith.constant 0 : i32
    %c0_i32_0 = arith.constant 0 : i32
    %c0_i32_1 = arith.constant 0 : i32
    %c0_i32_2 = arith.constant 0 : i32
    return %c0_i32, %c0_i32_0, %c0_i32_1 : i32, i32, i32
  }
  func.func @transform_10(%arg0: i32) -> (i32, i32) {
    %c0_i32 = arith.constant 0 : i32
    %c0_i32_0 = arith.constant 0 : i32
    %c0_i32_1 = arith.constant 0 : i32
    return %c0_i32, %c0_i32_0 : i32, i32
  }
  func.func @transform_11(%arg0: i32) -> (i32, i32, i32) {
    %c0_i32 = arith.constant 0 : i32
    %c0_i32_0 = arith.constant 0 : i32
    %c0_i32_1 = arith.constant 0 : i32
    %c0_i32_2 = arith.constant 0 : i32
    return %c0_i32, %c0_i32_0, %c0_i32_1 : i32, i32, i32
  }
  func.func @transform_12(%arg0: i32) -> (i32, i32) {
    %c0_i32 = arith.constant 0 : i32
    %c0_i32_0 = arith.constant 0 : i32
    %c0_i32_1 = arith.constant 0 : i32
    return %c0_i32, %c0_i32_0 : i32, i32
  }
  func.func @transform_13(%arg0: i32) -> (i32, i32, i32) {
    %c0_i32 = arith.constant 0 : i32
    %c0_i32_0 = arith.constant 0 : i32
    %c0_i32_1 = arith.constant 0 : i32
    %c0_i32_2 = arith.constant 0 : i32
    return %c0_i32, %c0_i32_0, %c0_i32_1 : i32, i32, i32
  }
  func.func @transform_14(%arg0: i32) -> (i32, i32) {
    %c0_i32 = arith.constant 0 : i32
    %c0_i32_0 = arith.constant 0 : i32
    %c0_i32_1 = arith.constant 0 : i32
    return %c0_i32, %c0_i32_0 : i32, i32
  }
  func.func @transform_15(%arg0: i32) -> (i32, i32, i32) {
    %c0_i32 = arith.constant 0 : i32
    %c0_i32_0 = arith.constant 0 : i32
    %c0_i32_1 = arith.constant 0 : i32
    return %arg0, %c0_i32, %c0_i32_0 : i32, i32, i32
  }
}

</mosaic_0001>

<llo_original>
// kernel: tpu_custom_call.1
$region0: #{tpu_custom_call.1}
  #allocation0 [shape = 'u32[]', space=smem, size = 0x4, offset = 0x4, fixed_abs, tag = 'smem constant byte address 0x4 - core index']
  #allocation1 [shape = 'u32[72,128]{1,0:T(1,128)}', space=vmem, size = 0x9000, scoped, tag = 'internal scratch']
  #allocation2 [shape = 'f32[32,32]{1,0:T(8,128)}', space=vmem, size = 0x4000, scoped, tag = 'scratch operand']
  %s0 = inlined_call_operand.vmem [shape: f32[2,16,4], index: 0, kind: input, shape index: {}]
  %s1 = inlined_call_operand.hbm [shape: bf16[3,4,32], index: 1, kind: input, shape index: {}]
  %s2 = inlined_call_operand.hbm [shape: f32[1,32], index: 2, kind: input, shape index: {}]
  %s3 = inlined_call_operand.hbm [shape: bf16[3,32,32], index: 3, kind: input, shape index: {}]
  %s4 = inlined_call_operand.hbm [shape: f32[1,32], index: 4, kind: input, shape index: {}]
  %s5 = inlined_call_operand.hbm [shape: bf16[4,32], index: 5, kind: input, shape index: {}]
  %s6 = inlined_call_operand.hbm [shape: f32[1,32], index: 6, kind: input, shape index: {}]
  %s7 = inlined_call_operand.hbm [shape: bf16[3,32,32], index: 7, kind: input, shape index: {}]
  %s8 = inlined_call_operand.hbm [shape: f32[1,32], index: 8, kind: input, shape index: {}]
  %s9 = inlined_call_operand.vmem [shape: bf16[3,32,32], index: 9, kind: input, shape index: {}]
  %s10 = inlined_call_operand.vmem [shape: f32[1,32], index: 10, kind: input, shape index: {}]
  %s11 = inlined_call_operand.hbm [shape: bf16[3,32,32], index: 11, kind: input, shape index: {}]
  %s12 = inlined_call_operand.vmem [shape: f32[1,32], index: 12, kind: input, shape index: {}]
  %s13 = inlined_call_operand.hbm [shape: bf16[3,32,32], index: 13, kind: input, shape index: {}]
  %s14 = inlined_call_operand.vmem [shape: f32[1,32], index: 14, kind: input, shape index: {}]
  %s15 = inlined_call_operand.hbm [shape: f32[2,16,32], index: 15, kind: output, shape index: {}]
  %s16 = sld [smem:[#allocation0]]
  $region133: #{tpu_custom_call.1} parent=0
    _
  %s18 = ssub.s32 1, %s16
  %s19 = scalar_select 0, %s18, %s16
  $region1: #{tpu_custom_call.1} parent=0
    #allocation3 [shape = 'u8[3072]{0}', space=vmem, size = 0xc00, scoped, tag = 'input window, operand 1, single buffered']
    #allocation4 [shape = 's32[2]{0}', space=sflag, size = 0x8, scoped, tag = 'scoped memory for tpu_custom_call.1']
    #allocation5 [shape = 's32[2]{0}', space=sflag, size = 0x8, scoped, tag = 'scoped memory for tpu_custom_call.1']
    #allocation6 [shape = 'u8[512]{0}', space=vmem, size = 0x400, scoped, tag = 'input window, operand 2, single buffered']
    #allocation7 [shape = 's32[1]{0}', space=sflag, size = 0x4, scoped, tag = 'scoped memory for tpu_custom_call.1']
    #allocation8 [shape = 'u8[24576]{0}', space=vmem, size = 0x6000, scoped, tag = 'input window, operand 3, single buffered']
    #allocation9 [shape = 'u8[512]{0}', space=vmem, size = 0x400, scoped, tag = 'input window, operand 4, single buffered']
    #allocation10 [shape = 's32[1]{0}', space=sflag, size = 0x4, scoped, tag = 'scoped memory for tpu_custom_call.1']
    #allocation11 [shape = 'u8[1024]{0}', space=vmem, size = 0x400, scoped, tag = 'input window, operand 5, single buffered']
    #allocation12 [shape = 'u8[512]{0}', space=vmem, size = 0x400, scoped, tag = 'input window, operand 6, single buffered']
    #allocation13 [shape = 's32[1]{0}', space=sflag, size = 0x4, scoped, tag = 'scoped memory for tpu_custom_call.1']
    #allocation14 [shape = 'u8[24576]{0}', space=vmem, size = 0x6000, scoped, tag = 'input window, operand 7, single buffered']
    #allocation15 [shape = 'u8[512]{0}', space=vmem, size = 0x400, scoped, tag = 'input window, operand 8, single buffered']
    #allocation16 [shape = 's32[1]{0}', space=sflag, size = 0x4, scoped, tag = 'scoped memory for tpu_custom_call.1']
    #allocation17 [shape = 'u8[24576]{0}', space=vmem, size = 0x6000, scoped, tag = 'input window, operand 11, single buffered']
    #allocation18 [shape = 'u8[24576]{0}', space=vmem, size = 0x6000, scoped, tag = 'input window, operand 13, single buffered']
    #allocation19 [shape = 's32[1]{0}', space=sflag, size = 0x4, scoped, tag = 'scoped memory for tpu_custom_call.1']
    #allocation20 [shape = 'u8[16384]{0}', space=vmem, size = 0x4000, scoped, tag = 'output window, operand 0']
    %20 = vsyncpa [#allocation4], 0
    %21 = vsyncpa [#allocation7], 0
    %22 = vsyncpa [#allocation10], 0
    %23 = vsyncpa [#allocation13], 0
    %24 = vsyncpa [#allocation16], 0
    %25 = vsyncpa [#allocation19], 0
    %26 = vsyncpa [#allocation5], 0
    %s27 = scalar_lea.sflag [#allocation5], 1
    %28 = vsyncpa %s27, 0
    loop: start=0, step=1, limit=4
    $region2: #{tpu_custom_call.1} parent=1 // loop_pre_header
      _
    $region3: #{tpu_custom_call.1} parent=1 // loop_header
      %s30 = sphi 0, %s34
      %p31 = scmp.ge.s32.totalorder %s30, 4
      %s40 = sphi 0, %s42
      %s43 = sphi 0, %s40
      %s44 = sphi 0, %s43
      %s60 = sphi 0, %s44
      %s64 = sphi 0, %s64
      %s66 = sphi 0, %s64
      %s67 = sphi 0, %s66
      %s81 = sphi 0, %s67
      %s85 = sphi 0, %s85
      %s87 = sphi 0, %s85
      %s88 = sphi 0, %s87
      %s102 = sphi 0, %s88
      %s106 = sphi 0, %s106
      %s108 = sphi 0, %s106
      %s109 = sphi 0, %s108
      %s123 = sphi 0, %s109
      %s127 = sphi 0, %s127
      %s129 = sphi 0, %s127
      %s130 = sphi 0, %s129
      %s144 = sphi 0, %s130
      %s148 = sphi 0, %s148
      %s150 = sphi 0, %s148
      %s151 = sphi 0, %s150
      %s165 = sphi 0, %s151
      %s169 = sphi 0, %s169
      %s171 = sphi 0, %s169
      %s172 = sphi 0, %s171
      %s186 = sphi 0, %s172
      %s190 = sphi 0, %s190
      %s192 = sphi 0, %s190
      %s193 = sphi 0, %s192
      %s207 = sphi 0, %s193
      %s211 = sphi 0, %s211
      %s213 = sphi 0, %s211
      %s214 = sphi 0, %s213
      %s228 = sphi 0, %s214
      %s232 = sphi 0, %s232
      %s234 = sphi 0, %s232
      %s235 = sphi 0, %s234
      %s249 = sphi 0, %s235
      %s253 = sphi 0, %s253
      %s255 = sphi 0, %s253
      %s256 = sphi 0, %s255
      %s270 = sphi 0, %s256
      %s274 = sphi 0, %s274
      %s276 = sphi 0, %s274
      %s277 = sphi 0, %s276
      %s291 = sphi 0, %s277
      %s295 = sphi 0, %s295
      %s297 = sphi 0, %s295
      %s298 = sphi 0, %s297
      %s312 = sphi 0, %s298
      %s316 = sphi 0, %s316
      %s318 = sphi 0, %s316
      %s319 = sphi 0, %s318
      %s333 = sphi 0, %s319
      %s337 = sphi 0, %s337
      %s339 = sphi 0, %s337
      %s340 = sphi 0, %s339
      %s354 = sphi 0, %s340
      %s360 = sphi 0, %s362
      %s363 = sphi 0, %s360
      %s364 = sphi 0, %s363
      %s380 = sphi 0, %s364
    $region4: #{tpu_custom_call.1} parent=1 // loop_header_branch
      %33 = sbr.rel (%p31) target = $region8
    $region5: #{tpu_custom_call.1} parent=1 // loop_body
      %s35 = ssub.s32 %s30, 1
      %s36 = ssub.s32 %s30, 2
      %s37 = sadd.s32 %s30, 1
      %s38 = ssub.s32 %s30, %s37
      %p39 = scmp.eq.s32.totalorder %s38, 0
      %s41 = sadd.s32 %s40, 1
      %s42 = scalar_select %p39, %s40, %s41
      %p45 = pneg %p39
      %p46 = scmp.eq.s32.totalorder %s30, 1
      %p47 = por %p45, %p46
      %p48 = scmp.ne.s32.totalorder %s40, %s43
      %p49 = scmp.eq.s32.totalorder %s30, 0
      %p50 = por %p48, %p49
      %p51 = scmp.ne.s32.totalorder %s40, %s43
      %p52 = scmp.eq.s32.totalorder %s35, 1
      %p53 = por %p51, %p52
      %p54 = scmp.ne.s32.totalorder %s43, %s44
      %p55 = scmp.eq.s32.totalorder %s35, 0
      %p56 = por %p54, %p55
      %p57 = scmp.ne.s32.totalorder %s43, %s44
      %p58 = scmp.eq.s32.totalorder %s36, 1
      %p59 = por %p57, %p58
      %p61 = scmp.ne.s32.totalorder %s44, %s60
      %p62 = scmp.eq.s32.totalorder %s36, 0
      %p63 = por %p61, %p62
      %s65 = sadd.s32 %s64, 1
      %p68 = scmp.eq.s32.totalorder %s30, 1
      %p69 = scmp.ne.s32.totalorder %s64, %s66
      %p70 = scmp.eq.s32.totalorder %s30, 0
      %p71 = por %p69, %p70
      %p72 = scmp.ne.s32.totalorder %s64, %s66
      %p73 = scmp.eq.s32.totalorder %s35, 1
      %p74 = por %p72, %p73
      %p75 = scmp.ne.s32.totalorder %s66, %s67
      %p76 = scmp.eq.s32.totalorder %s35, 0
      %p77 = por %p75, %p76
      %p78 = scmp.ne.s32.totalorder %s66, %s67
      %p79 = scmp.eq.s32.totalorder %s36, 1
      %p80 = por %p78, %p79
      %p82 = scmp.ne.s32.totalorder %s67, %s81
      %p83 = scmp.eq.s32.totalorder %s36, 0
      %p84 = por %p82, %p83
      %s86 = sadd.s32 %s85, 1
      %p89 = scmp.eq.s32.totalorder %s30, 1
      %p90 = scmp.ne.s32.totalorder %s85, %s87
      %p91 = scmp.eq.s32.totalorder %s30, 0
      %p92 = por %p90, %p91
      %p93 = scmp.ne.s32.totalorder %s85, %s87
      %p94 = scmp.eq.s32.totalorder %s35, 1
      %p95 = por %p93, %p94
      %p96 = scmp.ne.s32.totalorder %s87, %s88
      %p97 = scmp.eq.s32.totalorder %s35, 0
      %p98 = por %p96, %p97
      %p99 = scmp.ne.s32.totalorder %s87, %s88
      %p100 = scmp.eq.s32.totalorder %s36, 1
      %p101 = por %p99, %p100
      %p103 = scmp.ne.s32.totalorder %s88, %s102
      %p104 = scmp.eq.s32.totalorder %s36, 0
      %p105 = por %p103, %p104
      %s107 = sadd.s32 %s106, 1
      %p110 = scmp.eq.s32.totalorder %s30, 1
      %p111 = scmp.ne.s32.totalorder %s106, %s108
      %p112 = scmp.eq.s32.totalorder %s30, 0
      %p113 = por %p111, %p112
      %p114 = scmp.ne.s32.totalorder %s106, %s108
      %p115 = scmp.eq.s32.totalorder %s35, 1
      %p116 = por %p114, %p115
      %p117 = scmp.ne.s32.totalorder %s108, %s109
      %p118 = scmp.eq.s32.totalorder %s35, 0
      %p119 = por %p117, %p118
      %p120 = scmp.ne.s32.totalorder %s108, %s109
      %p121 = scmp.eq.s32.totalorder %s36, 1
      %p122 = por %p120, %p121
      %p124 = scmp.ne.s32.totalorder %s109, %s123
      %p125 = scmp.eq.s32.totalorder %s36, 0
      %p126 = por %p124, %p125
      %s128 = sadd.s32 %s127, 1
      %p131 = scmp.eq.s32.totalorder %s30, 1
      %p132 = scmp.ne.s32.totalorder %s127, %s129
      %p133 = scmp.eq.s32.totalorder %s30, 0
      %p134 = por %p132, %p133
      %p135 = scmp.ne.s32.totalorder %s127, %s129
      %p136 = scmp.eq.s32.totalorder %s35, 1
      %p137 = por %p135, %p136
      %p138 = scmp.ne.s32.totalorder %s129, %s130
      %p139 = scmp.eq.s32.totalorder %s35, 0
      %p140 = por %p138, %p139
      %p141 = scmp.ne.s32.totalorder %s129, %s130
      %p142 = scmp.eq.s32.totalorder %s36, 1
      %p143 = por %p141, %p142
      %p145 = scmp.ne.s32.totalorder %s130, %s144
      %p146 = scmp.eq.s32.totalorder %s36, 0
      %p147 = por %p145, %p146
      %s149 = sadd.s32 %s148, 1
      %p152 = scmp.eq.s32.totalorder %s30, 1
      %p153 = scmp.ne.s32.totalorder %s148, %s150
      %p154 = scmp.eq.s32.totalorder %s30, 0
      %p155 = por %p153, %p154
      %p156 = scmp.ne.s32.totalorder %s148, %s150
      %p157 = scmp.eq.s32.totalorder %s35, 1
      %p158 = por %p156, %p157
      %p159 = scmp.ne.s32.totalorder %s150, %s151
      %p160 = scmp.eq.s32.totalorder %s35, 0
      %p161 = por %p159, %p160
      %p162 = scmp.ne.s32.totalorder %s150, %s151
      %p163 = scmp.eq.s32.totalorder %s36, 1
      %p164 = por %p162, %p163
      %p166 = scmp.ne.s32.totalorder %s151, %s165
      %p167 = scmp.eq.s32.totalorder %s36, 0
      %p168 = por %p166, %p167
      %s170 = sadd.s32 %s169, 1
      %p173 = scmp.eq.s32.totalorder %s30, 1
      %p174 = scmp.ne.s32.totalorder %s169, %s171
      %p175 = scmp.eq.s32.totalorder %s30, 0
      %p176 = por %p174, %p175
      %p177 = scmp.ne.s32.totalorder %s169, %s171
      %p178 = scmp.eq.s32.totalorder %s35, 1
      %p179 = por %p177, %p178
      %p180 = scmp.ne.s32.totalorder %s171, %s172
      %p181 = scmp.eq.s32.totalorder %s35, 0
      %p182 = por %p180, %p181
      %p183 = scmp.ne.s32.totalorder %s171, %s172
      %p184 = scmp.eq.s32.totalorder %s36, 1
      %p185 = por %p183, %p184
      %p187 = scmp.ne.s32.totalorder %s172, %s186
      %p188 = scmp.eq.s32.totalorder %s36, 0
      %p189 = por %p187, %p188
      %s191 = sadd.s32 %s190, 1
      %p194 = scmp.eq.s32.totalorder %s30, 1
      %p195 = scmp.ne.s32.totalorder %s190, %s192
      %p196 = scmp.eq.s32.totalorder %s30, 0
      %p197 = por %p195, %p196
      %p198 = scmp.ne.s32.totalorder %s190, %s192
      %p199 = scmp.eq.s32.totalorder %s35, 1
      %p200 = por %p198, %p199
      %p201 = scmp.ne.s32.totalorder %s192, %s193
      %p202 = scmp.eq.s32.totalorder %s35, 0
      %p203 = por %p201, %p202
      %p204 = scmp.ne.s32.totalorder %s192, %s193
      %p205 = scmp.eq.s32.totalorder %s36, 1
      %p206 = por %p204, %p205
      %p208 = scmp.ne.s32.totalorder %s193, %s207
      %p209 = scmp.eq.s32.totalorder %s36, 0
      %p210 = por %p208, %p209
      %s212 = sadd.s32 %s211, 1
      %p215 = scmp.eq.s32.totalorder %s30, 1
      %p216 = scmp.ne.s32.totalorder %s211, %s213
      %p217 = scmp.eq.s32.totalorder %s30, 0
      %p218 = por %p216, %p217
      %p219 = scmp.ne.s32.totalorder %s211, %s213
      %p220 = scmp.eq.s32.totalorder %s35, 1
      %p221 = por %p219, %p220
      %p222 = scmp.ne.s32.totalorder %s213, %s214
      %p223 = scmp.eq.s32.totalorder %s35, 0
      %p224 = por %p222, %p223
      %p225 = scmp.ne.s32.totalorder %s213, %s214
      %p226 = scmp.eq.s32.totalorder %s36, 1
      %p227 = por %p225, %p226
      %p229 = scmp.ne.s32.totalorder %s214, %s228
      %p230 = scmp.eq.s32.totalorder %s36, 0
      %p231 = por %p229, %p230
      %s233 = sadd.s32 %s232, 1
      %p236 = scmp.eq.s32.totalorder %s30, 1
      %p237 = scmp.ne.s32.totalorder %s232, %s234
      %p238 = scmp.eq.s32.totalorder %s30, 0
      %p239 = por %p237, %p238
      %p240 = scmp.ne.s32.totalorder %s232, %s234
      %p241 = scmp.eq.s32.totalorder %s35, 1
      %p242 = por %p240, %p241
      %p243 = scmp.ne.s32.totalorder %s234, %s235
      %p244 = scmp.eq.s32.totalorder %s35, 0
      %p245 = por %p243, %p244
      %p246 = scmp.ne.s32.totalorder %s234, %s235
      %p247 = scmp.eq.s32.totalorder %s36, 1
      %p248 = por %p246, %p247
      %p250 = scmp.ne.s32.totalorder %s235, %s249
      %p251 = scmp.eq.s32.totalorder %s36, 0
      %p252 = por %p250, %p251
      %s254 = sadd.s32 %s253, 1
      %p257 = scmp.eq.s32.totalorder %s30, 1
      %p258 = scmp.ne.s32.totalorder %s253, %s255
      %p259 = scmp.eq.s32.totalorder %s30, 0
      %p260 = por %p258, %p259
      %p261 = scmp.ne.s32.totalorder %s253, %s255
      %p262 = scmp.eq.s32.totalorder %s35, 1
      %p263 = por %p261, %p262
      %p264 = scmp.ne.s32.totalorder %s255, %s256
      %p265 = scmp.eq.s32.totalorder %s35, 0
      %p266 = por %p264, %p265
      %p267 = scmp.ne.s32.totalorder %s255, %s256
      %p268 = scmp.eq.s32.totalorder %s36, 1
      %p269 = por %p267, %p268
      %p271 = scmp.ne.s32.totalorder %s256, %s270
      %p272 = scmp.eq.s32.totalorder %s36, 0
      %p273 = por %p271, %p272
      %s275 = sadd.s32 %s274, 1
      %p278 = scmp.eq.s32.totalorder %s30, 1
      %p279 = scmp.ne.s32.totalorder %s274, %s276
      %p280 = scmp.eq.s32.totalorder %s30, 0
      %p281 = por %p279, %p280
      %p282 = scmp.ne.s32.totalorder %s274, %s276
      %p283 = scmp.eq.s32.totalorder %s35, 1
      %p284 = por %p282, %p283
      %p285 = scmp.ne.s32.totalorder %s276, %s277
      %p286 = scmp.eq.s32.totalorder %s35, 0
      %p287 = por %p285, %p286
      %p288 = scmp.ne.s32.totalorder %s276, %s277
      %p289 = scmp.eq.s32.totalorder %s36, 1
      %p290 = por %p288, %p289
      %p292 = scmp.ne.s32.totalorder %s277, %s291
      %p293 = scmp.eq.s32.totalorder %s36, 0
      %p294 = por %p292, %p293
      %s296 = sadd.s32 %s295, 1
      %p299 = scmp.eq.s32.totalorder %s30, 1
      %p300 = scmp.ne.s32.totalorder %s295, %s297
      %p301 = scmp.eq.s32.totalorder %s30, 0
      %p302 = por %p300, %p301
      %p303 = scmp.ne.s32.totalorder %s295, %s297
      %p304 = scmp.eq.s32.totalorder %s35, 1
      %p305 = por %p303, %p304
      %p306 = scmp.ne.s32.totalorder %s297, %s298
      %p307 = scmp.eq.s32.totalorder %s35, 0
      %p308 = por %p306, %p307
      %p309 = scmp.ne.s32.totalorder %s297, %s298
      %p310 = scmp.eq.s32.totalorder %s36, 1
      %p311 = por %p309, %p310
      %p313 = scmp.ne.s32.totalorder %s298, %s312
      %p314 = scmp.eq.s32.totalorder %s36, 0
      %p315 = por %p313, %p314
      %s317 = sadd.s32 %s316, 1
      %p320 = scmp.eq.s32.totalorder %s30, 1
      %p321 = scmp.ne.s32.totalorder %s316, %s318
      %p322 = scmp.eq.s32.totalorder %s30, 0
      %p323 = por %p321, %p322
      %p324 = scmp.ne.s32.totalorder %s316, %s318
      %p325 = scmp.eq.s32.totalorder %s35, 1
      %p326 = por %p324, %p325
      %p327 = scmp.ne.s32.totalorder %s318, %s319
      %p328 = scmp.eq.s32.totalorder %s35, 0
      %p329 = por %p327, %p328
      %p330 = scmp.ne.s32.totalorder %s318, %s319
      %p331 = scmp.eq.s32.totalorder %s36, 1
      %p332 = por %p330, %p331
      %p334 = scmp.ne.s32.totalorder %s319, %s333
      %p335 = scmp.eq.s32.totalorder %s36, 0
      %p336 = por %p334, %p335
      %s338 = sadd.s32 %s337, 1
      %p341 = scmp.eq.s32.totalorder %s30, 1
      %p342 = scmp.ne.s32.totalorder %s337, %s339
      %p343 = scmp.eq.s32.totalorder %s30, 0
      %p344 = por %p342, %p343
      %p345 = scmp.ne.s32.totalorder %s337, %s339
      %p346 = scmp.eq.s32.totalorder %s35, 1
      %p347 = por %p345, %p346
      %p348 = scmp.ne.s32.totalorder %s339, %s340
      %p349 = scmp.eq.s32.totalorder %s35, 0
      %p350 = por %p348, %p349
      %p351 = scmp.ne.s32.totalorder %s339, %s340
      %p352 = scmp.eq.s32.totalorder %s36, 1
      %p353 = por %p351, %p352
      %p355 = scmp.ne.s32.totalorder %s340, %s354
      %p356 = scmp.eq.s32.totalorder %s36, 0
      %p357 = por %p355, %p356
      %s358 = ssub.s32 %s30, %s37
      %p359 = scmp.eq.s32.totalorder %s358, 0
      %s361 = sadd.s32 %s360, 1
      %s362 = scalar_select %p359, %s360, %s361
      %p365 = pneg %p359
      %p366 = scmp.eq.s32.totalorder %s30, 1
      %p367 = por %p365, %p366
      %p368 = scmp.ne.s32.totalorder %s360, %s363
      %p369 = scmp.eq.s32.totalorder %s30, 0
      %p370 = por %p368, %p369
      %p371 = scmp.ne.s32.totalorder %s360, %s363
      %p372 = scmp.eq.s32.totalorder %s35, 1
      %p373 = por %p371, %p372
      %p374 = scmp.ne.s32.totalorder %s363, %s364
      %p375 = scmp.eq.s32.totalorder %s35, 0
      %p376 = por %p374, %p375
      %p377 = scmp.ne.s32.totalorder %s363, %s364
      %p378 = scmp.eq.s32.totalorder %s36, 1
      %p379 = por %p377, %p378
      %p381 = scmp.ne.s32.totalorder %s364, %s380
      %p382 = scmp.eq.s32.totalorder %s36, 0
      %p383 = por %p381, %p382
      %p384 = scmp.le.s32.totalorder 1, %s30
      %p385 = scmp.lt.s32.totalorder %s30, 3
      %p386 = pnand %p384, %p385
      %p387 = pneg %p386
      // Predicated region
      $region9: #{tpu_custom_call.1} parent=5 // pred_check
        _
      $region10: #{tpu_custom_call.1} parent=5 // pred_check_branch
        %389 = sbr.rel (%p386) target = $region12
      $region11: #{tpu_custom_call.1} parent=5 // pred_region
        %s390 = ssub.s32 %s30, 1
        // Predicated region
        $region13: #{tpu_custom_call.1} parent=11 // pred_check
          %p391 = pneg %p77
        $region14: #{tpu_custom_call.1} parent=11 // pred_check_branch
          %393 = sbr.rel (%p391) target = $region16
        $region15: #{tpu_custom_call.1} parent=11 // pred_region
          %395 = vsyncadd [#allocation4], 0
          %s396 = sshll.u32 %s1, 4
          %s397 = int_to_ptr.hbm [resolvable:$true] %s396
          %s398 = sshll.u32 [#allocation3], 4
          %s399 = int_to_ptr.vmem [resolvable:$true] %s398
          %404 = dma.hbm_to_vmem [thread:$0]  %s397, 96, %s399, [#allocation4], 32, 32, 2
        $region16: #{tpu_custom_call.1} parent=11 // pred_fallthru
          _
        // Predicated region
        $region17: #{tpu_custom_call.1} parent=11 // pred_check
          %p405 = pneg %p98
        $region18: #{tpu_custom_call.1} parent=11 // pred_check_branch
          %407 = sbr.rel (%p405) target = $region20
        $region19: #{tpu_custom_call.1} parent=11 // pred_region
          %409 = vsyncadd [#allocation7], 0
          %s411 = sshll.u32 %s2, 4
          %s412 = int_to_ptr.hbm [resolvable:$true] %s411
          %s413 = sshll.u32 [#allocation6], 4
          %s414 = int_to_ptr.vmem [resolvable:$true] %s413
          %416 = dma.hbm_to_vmem [thread:$0]  %s412, 16, %s414, [#allocation7]
        $region20: #{tpu_custom_call.1} parent=11 // pred_fallthru
          _
        // Predicated region
        $region21: #{tpu_custom_call.1} parent=11 // pred_check
          %p417 = pneg %p119
        $region22: #{tpu_custom_call.1} parent=11 // pred_check_branch
          %419 = sbr.rel (%p417) target = $region24
        $region23: #{tpu_custom_call.1} parent=11 // pred_region
          %421 = vsyncadd [#allocation7], 0
          %s422 = sshll.u32 %s3, 4
          %s423 = int_to_ptr.hbm [resolvable:$true] %s422
          %s424 = sshll.u32 [#allocation8], 4
          %s425 = int_to_ptr.vmem [resolvable:$true] %s424
          %430 = dma.hbm_to_vmem [thread:$0]  %s423, 768, %s425, [#allocation7], 64, 64, 4
        $region24: #{tpu_custom_call.1} parent=11 // pred_fallthru
          _
        // Predicated region
        $region25: #{tpu_custom_call.1} parent=11 // pred_check
          %p431 = pneg %p140
        $region26: #{tpu_custom_call.1} parent=11 // pred_check_branch
          %433 = sbr.rel (%p431) target = $region28
        $region27: #{tpu_custom_call.1} parent=11 // pred_region
          %435 = vsyncadd [#allocation10], 0
          %s437 = sshll.u32 %s4, 4
          %s438 = int_to_ptr.hbm [resolvable:$true] %s437
          %s439 = sshll.u32 [#allocation9], 4
          %s440 = int_to_ptr.vmem [resolvable:$true] %s439
          %442 = dma.hbm_to_vmem [thread:$0]  %s438, 16, %s440, [#allocation10]
        $region28: #{tpu_custom_call.1} parent=11 // pred_fallthru
          _
        // Predicated region
        $region29: #{tpu_custom_call.1} parent=11 // pred_check
          %p443 = pneg %p161
        $region30: #{tpu_custom_call.1} parent=11 // pred_check_branch
          %445 = sbr.rel (%p443) target = $region32
        $region31: #{tpu_custom_call.1} parent=11 // pred_region
          %447 = vsyncadd [#allocation10], 0
          %s449 = sshll.u32 %s5, 4
          %s450 = int_to_ptr.hbm [resolvable:$true] %s449
          %s451 = sshll.u32 [#allocation11], 4
          %s452 = int_to_ptr.vmem [resolvable:$true] %s451
          %454 = dma.hbm_to_vmem [thread:$0]  %s450, 32, %s452, [#allocation10]
        $region32: #{tpu_custom_call.1} parent=11 // pred_fallthru
          _
        // Predicated region
        $region33: #{tpu_custom_call.1} parent=11 // pred_check
          %p455 = pneg %p182
        $region34: #{tpu_custom_call.1} parent=11 // pred_check_branch
          %457 = sbr.rel (%p455) target = $region36
        $region35: #{tpu_custom_call.1} parent=11 // pred_region
          %459 = vsyncadd [#allocation13], 0
          %s461 = sshll.u32 %s6, 4
          %s462 = int_to_ptr.hbm [resolvable:$true] %s461
          %s463 = sshll.u32 [#allocation12], 4
          %s464 = int_to_ptr.vmem [resolvable:$true] %s463
          %466 = dma.hbm_to_vmem [thread:$0]  %s462, 16, %s464, [#allocation13]
        $region36: #{tpu_custom_call.1} parent=11 // pred_fallthru
          _
        // Predicated region
        $region37: #{tpu_custom_call.1} parent=11 // pred_check
          %p467 = pneg %p203
        $region38: #{tpu_custom_call.1} parent=11 // pred_check_branch
          %469 = sbr.rel (%p467) target = $region40
        $region39: #{tpu_custom_call.1} parent=11 // pred_region
          %471 = vsyncadd [#allocation13], 0
          %s472 = sshll.u32 %s7, 4
          %s473 = int_to_ptr.hbm [resolvable:$true] %s472
          %s474 = sshll.u32 [#allocation14], 4
          %s475 = int_to_ptr.vmem [resolvable:$true] %s474
          %480 = dma.hbm_to_vmem [thread:$0]  %s473, 768, %s475, [#allocation13], 64, 64, 4
        $region40: #{tpu_custom_call.1} parent=11 // pred_fallthru
          _
        // Predicated region
        $region41: #{tpu_custom_call.1} parent=11 // pred_check
          %p481 = pneg %p224
        $region42: #{tpu_custom_call.1} parent=11 // pred_check_branch
          %483 = sbr.rel (%p481) target = $region44
        $region43: #{tpu_custom_call.1} parent=11 // pred_region
          %485 = vsyncadd [#allocation16], 0
          %s487 = sshll.u32 %s8, 4
          %s488 = int_to_ptr.hbm [resolvable:$true] %s487
          %s489 = sshll.u32 [#allocation15], 4
          %s490 = int_to_ptr.vmem [resolvable:$true] %s489
          %492 = dma.hbm_to_vmem [thread:$0]  %s488, 16, %s490, [#allocation16]
        $region44: #{tpu_custom_call.1} parent=11 // pred_fallthru
          _
        // Predicated region
        $region45: #{tpu_custom_call.1} parent=11 // pred_check
          %p493 = pneg %p245
        $region46: #{tpu_custom_call.1} parent=11 // pred_check_branch
          %495 = sbr.rel (%p493) target = $region48
        $region47: #{tpu_custom_call.1} parent=11 // pred_region
          _
        $region48: #{tpu_custom_call.1} parent=11 // pred_fallthru
          _
        // Predicated region
        $region49: #{tpu_custom_call.1} parent=11 // pred_check
          %p496 = pneg %p266
        $region50: #{tpu_custom_call.1} parent=11 // pred_check_branch
          %498 = sbr.rel (%p496) target = $region52
        $region51: #{tpu_custom_call.1} parent=11 // pred_region
          _
        $region52: #{tpu_custom_call.1} parent=11 // pred_fallthru
          _
        // Predicated region
        $region53: #{tpu_custom_call.1} parent=11 // pred_check
          %p499 = pneg %p287
        $region54: #{tpu_custom_call.1} parent=11 // pred_check_branch
          %501 = sbr.rel (%p499) target = $region56
        $region55: #{tpu_custom_call.1} parent=11 // pred_region
          %503 = vsyncadd [#allocation16], 0
          %s504 = sshll.u32 %s11, 4
          %s505 = int_to_ptr.hbm [resolvable:$true] %s504
          %s506 = sshll.u32 [#allocation17], 4
          %s507 = int_to_ptr.vmem [resolvable:$true] %s506
          %512 = dma.hbm_to_vmem [thread:$0]  %s505, 768, %s507, [#allocation16], 64, 64, 4
        $region56: #{tpu_custom_call.1} parent=11 // pred_fallthru
          _
        // Predicated region
        $region57: #{tpu_custom_call.1} parent=11 // pred_check
          %p513 = pneg %p308
        $region58: #{tpu_custom_call.1} parent=11 // pred_check_branch
          %515 = sbr.rel (%p513) target = $region60
        $region59: #{tpu_custom_call.1} parent=11 // pred_region
          _
        $region60: #{tpu_custom_call.1} parent=11 // pred_fallthru
          _
        // Predicated region
        $region61: #{tpu_custom_call.1} parent=11 // pred_check
          %p516 = pneg %p329
        $region62: #{tpu_custom_call.1} parent=11 // pred_check_branch
          %518 = sbr.rel (%p516) target = $region64
        $region63: #{tpu_custom_call.1} parent=11 // pred_region
          %520 = vsyncadd [#allocation19], 0
          %s521 = sshll.u32 %s13, 4
          %s522 = int_to_ptr.hbm [resolvable:$true] %s521
          %s523 = sshll.u32 [#allocation18], 4
          %s524 = int_to_ptr.vmem [resolvable:$true] %s523
          %529 = dma.hbm_to_vmem [thread:$0]  %s522, 768, %s524, [#allocation19], 64, 64, 4
        $region64: #{tpu_custom_call.1} parent=11 // pred_fallthru
          _
        // Predicated region
        $region65: #{tpu_custom_call.1} parent=11 // pred_check
          %p530 = pneg %p350
        $region66: #{tpu_custom_call.1} parent=11 // pred_check_branch
          %532 = sbr.rel (%p530) target = $region68
        $region67: #{tpu_custom_call.1} parent=11 // pred_region
          _
        $region68: #{tpu_custom_call.1} parent=11 // pred_fallthru
          _
      $region12: #{tpu_custom_call.1} parent=5 // pred_fallthru
        _
      %p533 = scmp.lt.s32.totalorder %s30, 2
      // Predicated region
      $region69: #{tpu_custom_call.1} parent=5 // pred_check
        %p534 = pneg %p533
      $region70: #{tpu_custom_call.1} parent=5 // pred_check_branch
        %536 = sbr.rel (%p534) target = $region72
      $region71: #{tpu_custom_call.1} parent=5 // pred_region
        // Predicated region
        $region73: #{tpu_custom_call.1} parent=71 // pred_check
          %p537 = pneg %p50
        $region74: #{tpu_custom_call.1} parent=71 // pred_check_branch
          %539 = sbr.rel (%p537) target = $region76
        $region75: #{tpu_custom_call.1} parent=71 // pred_region
          %p540 = scmp.lt.s32.totalorder %s30, 1
          %s541 = scalar_select %p540, %s30, 1
          %s542 = smul.addr %s541, 2
          %s543 = smul.addr %s542, 8
          %s544 = scalar_lea.vmem %s0, %s543
        $region76: #{tpu_custom_call.1} parent=71 // pred_fallthru
          _
      $region72: #{tpu_custom_call.1} parent=5 // pred_fallthru
        _
      %p545 = scmp.le.s32.totalorder 1, %s30
      %p546 = scmp.lt.s32.totalorder %s30, 3
      %p547 = pnand %p545, %p546
      %p548 = pneg %p547
      // Predicated region
      $region77: #{tpu_custom_call.1} parent=5 // pred_check
        _
      $region78: #{tpu_custom_call.1} parent=5 // pred_check_branch
        %550 = sbr.rel (%p547) target = $region80
      $region79: #{tpu_custom_call.1} parent=5 // pred_region
        %s551 = ssub.s32 %s30, 1
        // Predicated region
        $region81: #{tpu_custom_call.1} parent=79 // pred_check
          %p552 = pneg %p77
        $region82: #{tpu_custom_call.1} parent=79 // pred_check_branch
          %554 = sbr.rel (%p552) target = $region84
        $region83: #{tpu_custom_call.1} parent=79 // pred_region
          %556 = dma.done [#allocation4], 96
        $region84: #{tpu_custom_call.1} parent=79 // pred_fallthru
          _
        // Predicated region
        $region85: #{tpu_custom_call.1} parent=79 // pred_check
          %p557 = pneg %p98
        $region86: #{tpu_custom_call.1} parent=79 // pred_check_branch
          %559 = sbr.rel (%p557) target = $region88
        $region87: #{tpu_custom_call.1} parent=79 // pred_region
          %561 = dma.done [#allocation7], 16
        $region88: #{tpu_custom_call.1} parent=79 // pred_fallthru
          _
        // Predicated region
        $region89: #{tpu_custom_call.1} parent=79 // pred_check
          %p562 = pneg %p119
        $region90: #{tpu_custom_call.1} parent=79 // pred_check_branch
          %564 = sbr.rel (%p562) target = $region92
        $region91: #{tpu_custom_call.1} parent=79 // pred_region
          %566 = dma.done [#allocation7], 768
        $region92: #{tpu_custom_call.1} parent=79 // pred_fallthru
          _
        // Predicated region
        $region93: #{tpu_custom_call.1} parent=79 // pred_check
          %p567 = pneg %p140
        $region94: #{tpu_custom_call.1} parent=79 // pred_check_branch
          %569 = sbr.rel (%p567) target = $region96
        $region95: #{tpu_custom_call.1} parent=79 // pred_region
          %571 = dma.done [#allocation10], 16
        $region96: #{tpu_custom_call.1} parent=79 // pred_fallthru
          _
        // Predicated region
        $region97: #{tpu_custom_call.1} parent=79 // pred_check
          %p572 = pneg %p161
        $region98: #{tpu_custom_call.1} parent=79 // pred_check_branch
          %574 = sbr.rel (%p572) target = $region100
        $region99: #{tpu_custom_call.1} parent=79 // pred_region
          %576 = dma.done [#allocation10], 32
        $region100: #{tpu_custom_call.1} parent=79 // pred_fallthru
          _
        // Predicated region
        $region101: #{tpu_custom_call.1} parent=79 // pred_check
          %p577 = pneg %p182
        $region102: #{tpu_custom_call.1} parent=79 // pred_check_branch
          %579 = sbr.rel (%p577) target = $region104
        $region103: #{tpu_custom_call.1} parent=79 // pred_region
          %581 = dma.done [#allocation13], 16
        $region104: #{tpu_custom_call.1} parent=79 // pred_fallthru
          _
        // Predicated region
        $region105: #{tpu_custom_call.1} parent=79 // pred_check
          %p582 = pneg %p203
        $region106: #{tpu_custom_call.1} parent=79 // pred_check_branch
          %584 = sbr.rel (%p582) target = $region108
        $region107: #{tpu_custom_call.1} parent=79 // pred_region
          %586 = dma.done [#allocation13], 768
        $region108: #{tpu_custom_call.1} parent=79 // pred_fallthru
          _
        // Predicated region
        $region109: #{tpu_custom_call.1} parent=79 // pred_check
          %p587 = pneg %p224
        $region110: #{tpu_custom_call.1} parent=79 // pred_check_branch
          %589 = sbr.rel (%p587) target = $region112
        $region111: #{tpu_custom_call.1} parent=79 // pred_region
          %591 = dma.done [#allocation16], 16
        $region112: #{tpu_custom_call.1} parent=79 // pred_fallthru
          _
        // Predicated region
        $region113: #{tpu_custom_call.1} parent=79 // pred_check
          %p592 = pneg %p287
        $region114: #{tpu_custom_call.1} parent=79 // pred_check_branch
          %594 = sbr.rel (%p592) target = $region116
        $region115: #{tpu_custom_call.1} parent=79 // pred_region
          %596 = dma.done [#allocation16], 768
        $region116: #{tpu_custom_call.1} parent=79 // pred_fallthru
          _
        // Predicated region
        $region117: #{tpu_custom_call.1} parent=79 // pred_check
          %p597 = pneg %p329
        $region118: #{tpu_custom_call.1} parent=79 // pred_check_branch
          %599 = sbr.rel (%p597) target = $region120
        $region119: #{tpu_custom_call.1} parent=79 // pred_region
          %601 = dma.done [#allocation19], 768
        $region120: #{tpu_custom_call.1} parent=79 // pred_fallthru
          _
        %p602 = scmp.lt.s32.totalorder %s35, 1
        %s603 = scalar_select %p602, %s35, 1
        %s604 = smul.addr %s603, 2
        %s605 = smul.addr %s604, 8
        %s606 = scalar_lea.vmem %s0, %s605
        %p607 = pneg %p56
        %p608 = pneg %p53
        %p609 = pneg %p77
        %p610 = pneg %p74
        %p611 = pneg %p98
        %p612 = pneg %p95
        %p613 = pneg %p119
        %p614 = pneg %p116
        %p615 = pneg %p140
        %p616 = pneg %p137
        %p617 = pneg %p161
        %p618 = pneg %p158
        %p619 = pneg %p182
        %p620 = pneg %p179
        %p621 = pneg %p203
        %p622 = pneg %p200
        %p623 = pneg %p224
        %p624 = pneg %p221
        %p625 = pneg %p245
        %p626 = pneg %p242
        %p627 = pneg %p266
        %p628 = pneg %p263
        %p629 = pneg %p287
        %p630 = pneg %p284
        %p631 = pneg %p308
        %p632 = pneg %p305
        %p633 = pneg %p329
        %p634 = pneg %p326
        %p635 = pneg %p350
        %p636 = pneg %p347
        %p637 = pneg %p376
        %p638 = pneg %p373
        %s639 = sand.u32 %s363, 1
        %s640 = scalar_lea.sflag [#allocation5], %s639
        %s641 = sand.u32 %s363, 1
        %s642 = smul.addr %s641, 16
        %s643 = scalar_lea.vmem [#allocation20], %s642
        %p644 = scmp.lt.s32.totalorder %s35, 1
        %s645 = scalar_select %p644, %s35, 1
        %s646 = smul.addr %s645, 2
        %s647 = smul.addr %s646, 8
        %s648 = scalar_lea.vmem %s0, %s647
        %vm650 = vcmask 261120
        %651 = vst.msk [vmem:[#allocation2] sm:$0xff] %vm650, 0.0
        %652 = vst.msk [vmem:[#allocation2 + $0x8] sm:$0xff] %vm650, 0.0
        %653 = vst.msk [vmem:[#allocation2 + $0x10] sm:$0xff] %vm650, 0.0
        %654 = vst.msk [vmem:[#allocation2 + $0x18] sm:$0xff] %vm650, 0.0
        %v655 = vld [vmem:[%s648] sm:$0xff]
        %v656 = vld [vmem:[%s648 + $0x8] sm:$0xff]
        %vm657 = vcmask 31744
        %658 = vst.msk [vmem:[#allocation2 + $0x8] sm:$0xff] %vm657, %v655
        %659 = vst.msk [vmem:[#allocation2 + $0x10] sm:$0xff] %vm657, %v656
        %v660 = vld [vmem:[#allocation2 + $0x7] sm:$0xff]
        %v661 = vld [vmem:[#allocation2 + $0xf] sm:$0xff]
        %v662 = vpack.c.bf16 %v661, %v660
        %v663 = vld [vmem:[#allocation3] sm:$0x3]
        %v664 = vpack.c.bf16 %v656, %v655
        %s665 = scalar_lea.vmem [#allocation3], 2
        %v666 = vld [vmem:[%s665] sm:$0x3]
        %v668 = vsel %vm657, %v664, 0
        %vm670 = vcmask 1041408
        %v672 = vsel %vm670, %v666, 0
        %674 = vmatpush.bf16.msra.mxu0 0
        %675 = vmatpush.bf16.msra.mxu0 0
        %676 = vmatpush.bf16.msra.mxu0 0
        %677 = vmatpush.bf16.msra.mxu0 0
        %678 = vmatpush.bf16.msra.mxu0 0
        %679 = vmatpush.bf16.msra.mxu0 0
        %680 = vmatpush.bf16.msra.mxu0 0
        %681 = vmatpush.bf16.msra.mxu0 %v672
        %682 = vmatmul.bf16.gmra.mxu0 %v668
        %v683 = vpop.f32.mrf.mxu0
        %v684 = vadd.f32 0.0, %v683
        %v685 = vpop.f32.mrf.mxu0
        %v686 = vadd.f32 0.0, %v685
        %687 = vdwg.mxu0
        %v689 = vsel %vm657, %v662, 0
        %v692 = vsel %vm670, %v663, 0
        %694 = vmatpush.bf16.msra.mxu0 0
        %695 = vmatpush.bf16.msra.mxu0 0
        %696 = vmatpush.bf16.msra.mxu0 0
        %697 = vmatpush.bf16.msra.mxu0 0
        %698 = vmatpush.bf16.msra.mxu0 0
        %699 = vmatpush.bf16.msra.mxu0 0
        %700 = vmatpush.bf16.msra.mxu0 0
        %701 = vmatpush.bf16.msra.mxu0 %v692
        %702 = vmatmul.bf16.gmra.mxu0 %v689
        %v703 = vpop.f32.mrf.mxu0
        %v704 = vadd.f32 %v684, %v703
        %v705 = vpop.f32.mrf.mxu0
        %v706 = vadd.f32 %v686, %v705
        %707 = vdwg.mxu0
        %v708 = vld [vmem:[#allocation2 + $0x9] sm:$0xff]
        %v709 = vld [vmem:[#allocation2 + $0x11] sm:$0xff]
        %v710 = vpack.c.bf16 %v709, %v708
        %s711 = scalar_lea.vmem [#allocation3], 4
        %v712 = vld [vmem:[%s711] sm:$0x3]
        %v714 = vsel %vm657, %v710, 0
        %v717 = vsel %vm670, %v712, 0
        %719 = vmatpush.bf16.msra.mxu0 0
        %720 = vmatpush.bf16.msra.mxu0 0
        %721 = vmatpush.bf16.msra.mxu0 0
        %722 = vmatpush.bf16.msra.mxu0 0
        %723 = vmatpush.bf16.msra.mxu0 0
        %724 = vmatpush.bf16.msra.mxu0 0
        %725 = vmatpush.bf16.msra.mxu0 0
        %726 = vmatpush.bf16.msra.mxu0 %v717
        %727 = vmatmul.bf16.gmra.mxu0 %v714
        %v728 = vpop.f32.mrf.mxu0
        %v729 = vadd.f32 0.0, %v728
        %v730 = vpop.f32.mrf.mxu0
        %v731 = vadd.f32 0.0, %v730
        %732 = vdwg.mxu0
        %v733 = vadd.f32 %v704, %v729
        %v734 = vadd.f32 %v706, %v731
        %v735 = vld [vmem:[#allocation6] sm:$0x1]
        %v737 = vperm.slane %v735, 0
        %v739 = vadd.f32 %v733, %v737
        %v740 = vadd.f32 %v734, %v737
        %v741 = vmax.f32 %v739, 0.0
        %v742 = vmax.f32 %v740, 0.0
        %743 = vst.msk [vmem:[#allocation2 + $0x8] sm:$0xff] %vm650, %v741
        %744 = vst.msk [vmem:[#allocation2 + $0x10] sm:$0xff] %vm650, %v742
        %v745 = vld [vmem:[#allocation2 + $0x7] sm:$0xff]
        %v746 = vld [vmem:[#allocation2 + $0xf] sm:$0xff]
        %v747 = vpack.c.bf16 %v746, %v745
        %v748 = vld [vmem:[#allocation8] sm:$0xf]
        %v749 = vld [vmem:[#allocation8 + $0x4] sm:$0xf]
        %v750 = vld [vmem:[#allocation8 + $0x8] sm:$0xf]
        %v751 = vld [vmem:[#allocation8 + $0xc] sm:$0xf]
        %v752 = vpack.c.bf16 %v742, %v741
        %s753 = scalar_lea.vmem [#allocation8], 16
        %v754 = vld [vmem:[%s753] sm:$0xf]
        %v755 = vld [vmem:[%s753 + $0x4] sm:$0xf]
        %v756 = vld [vmem:[%s753 + $0x8] sm:$0xf]
        %v757 = vld [vmem:[%s753 + $0xc] sm:$0xf]
        %v762 = vunpack.c.l.b16 %v754
        %v763 = vunpack.c.l.b16 %v755
        %v764 = vunpack.c.l.b16 %v756
        %v765 = vunpack.c.l.b16 %v757
        %v766 = vpack.c.b16 %v763, %v762
        %v767 = vpack.c.b16 %v765, %v764
        %v771 = vsel %vm650, %v752, 0
        %773 = vmatpush.bf16.msra.mxu0 0
        %774 = vmatpush.bf16.msra.mxu0 0
        %775 = vmatpush.bf16.msra.mxu0 0
        %776 = vmatpush.bf16.msra.mxu0 0
        %777 = vmatpush.bf16.msra.mxu0 0
        %778 = vmatpush.bf16.msra.mxu0 0
        %779 = vmatpush.bf16.msra.mxu0 %v767
        %780 = vmatpush.bf16.msra.mxu0 %v766
        %781 = vmatmul.bf16.gmra.mxu0 %v771
        %v782 = vpop.f32.mrf.mxu0
        %v783 = vadd.f32 0.0, %v782
        %v784 = vpop.f32.mrf.mxu0
        %v785 = vadd.f32 0.0, %v784
        %786 = vdwg.mxu0
        %v791 = vunpack.c.l.b16 %v748
        %v792 = vunpack.c.l.b16 %v749
        %v793 = vunpack.c.l.b16 %v750
        %v794 = vunpack.c.l.b16 %v751
        %v795 = vpack.c.b16 %v792, %v791
        %v796 = vpack.c.b16 %v794, %v793
        %v800 = vsel %vm650, %v747, 0
        %802 = vmatpush.bf16.msra.mxu0 0
        %803 = vmatpush.bf16.msra.mxu0 0
        %804 = vmatpush.bf16.msra.mxu0 0
        %805 = vmatpush.bf16.msra.mxu0 0
        %806 = vmatpush.bf16.msra.mxu0 0
        %807 = vmatpush.bf16.msra.mxu0 0
        %808 = vmatpush.bf16.msra.mxu0 %v796
        %809 = vmatpush.bf16.msra.mxu0 %v795
        %810 = vmatmul.bf16.gmra.mxu0 %v800
        %v811 = vpop.f32.mrf.mxu0
        %v812 = vadd.f32 %v783, %v811
        %v813 = vpop.f32.mrf.mxu0
        %v814 = vadd.f32 %v785, %v813
        %815 = vdwg.mxu0
        %v816 = vld [vmem:[#allocation2 + $0x9] sm:$0xff]
        %v817 = vld [vmem:[#allocation2 + $0x11] sm:$0xff]
        %v818 = vpack.c.bf16 %v817, %v816
        %s819 = scalar_lea.vmem [#allocation8], 32
        %v820 = vld [vmem:[%s819] sm:$0xf]
        %v821 = vld [vmem:[%s819 + $0x4] sm:$0xf]
        %v822 = vld [vmem:[%s819 + $0x8] sm:$0xf]
        %v823 = vld [vmem:[%s819 + $0xc] sm:$0xf]
        %v828 = vunpack.c.l.b16 %v820
        %v829 = vunpack.c.l.b16 %v821
        %v830 = vunpack.c.l.b16 %v822
        %v831 = vunpack.c.l.b16 %v823
        %v832 = vpack.c.b16 %v829, %v828
        %v833 = vpack.c.b16 %v831, %v830
        %v837 = vsel %vm650, %v818, 0
        %839 = vmatpush.bf16.msra.mxu0 0
        %840 = vmatpush.bf16.msra.mxu0 0
        %841 = vmatpush.bf16.msra.mxu0 0
        %842 = vmatpush.bf16.msra.mxu0 0
        %843 = vmatpush.bf16.msra.mxu0 0
        %844 = vmatpush.bf16.msra.mxu0 0
        %845 = vmatpush.bf16.msra.mxu0 %v833
        %846 = vmatpush.bf16.msra.mxu0 %v832
        %847 = vmatmul.bf16.gmra.mxu0 %v837
        %v848 = vpop.f32.mrf.mxu0
        %v849 = vadd.f32 0.0, %v848
        %v850 = vpop.f32.mrf.mxu0
        %v851 = vadd.f32 0.0, %v850
        %852 = vdwg.mxu0
        %v853 = vadd.f32 %v812, %v849
        %v854 = vadd.f32 %v814, %v851
        %v855 = vld [vmem:[#allocation9] sm:$0x1]
        %v857 = vperm.slane %v855, 0
        %v859 = vadd.f32 %v853, %v857
        %v860 = vadd.f32 %v854, %v857
        %v861 = vmax.f32 %v859, 0.0
        %v862 = vmax.f32 %v860, 0.0
        %v863 = vld [vmem:[#allocation11] sm:$0x3]
        %v864 = vld [vmem:[#allocation12] sm:$0x1]
        %v866 = vperm.slane %v864, 0
        %v869 = vsel %vm670, %v863, 0
        %871 = vmatpush.bf16.msra.mxu0 0
        %872 = vmatpush.bf16.msra.mxu0 0
        %873 = vmatpush.bf16.msra.mxu0 0
        %874 = vmatpush.bf16.msra.mxu0 0
        %875 = vmatpush.bf16.msra.mxu0 0
        %876 = vmatpush.bf16.msra.mxu0 0
        %877 = vmatpush.bf16.msra.mxu0 0
        %878 = vmatpush.bf16.msra.mxu0 %v869
        %879 = vmatmul.bf16.gmra.mxu0 %v668
        %v880 = vpop.f32.mrf.mxu0
        %v881 = vadd.f32 %v866, %v880
        %v882 = vpop.f32.mrf.mxu0
        %v883 = vadd.f32 %v866, %v882
        %884 = vdwg.mxu0
        %v885 = vadd.f32 %v881, %v861
        %v886 = vadd.f32 %v883, %v862
        %v887 = vmax.f32 %v885, 0.0
        %v888 = vmax.f32 %v886, 0.0
        %889 = vst.msk [vmem:[#allocation2 + $0x8] sm:$0xff] %vm650, %v887
        %890 = vst.msk [vmem:[#allocation2 + $0x10] sm:$0xff] %vm650, %v888
        %v891 = vld [vmem:[#allocation2 + $0x6] sm:$0xff]
        %v892 = vld [vmem:[#allocation2 + $0xe] sm:$0xff]
        %v893 = vpack.c.bf16 %v892, %v891
        %v894 = vld [vmem:[#allocation14] sm:$0xf]
        %v895 = vld [vmem:[#allocation14 + $0x4] sm:$0xf]
        %v896 = vld [vmem:[#allocation14 + $0x8] sm:$0xf]
        %v897 = vld [vmem:[#allocation14 + $0xc] sm:$0xf]
        %v898 = vpack.c.bf16 %v888, %v887
        %s899 = scalar_lea.vmem [#allocation14], 16
        %v900 = vld [vmem:[%s899] sm:$0xf]
        %v901 = vld [vmem:[%s899 + $0x4] sm:$0xf]
        %v902 = vld [vmem:[%s899 + $0x8] sm:$0xf]
        %v903 = vld [vmem:[%s899 + $0xc] sm:$0xf]
        %v908 = vunpack.c.l.b16 %v900
        %v909 = vunpack.c.l.b16 %v901
        %v910 = vunpack.c.l.b16 %v902
        %v911 = vunpack.c.l.b16 %v903
        %v912 = vpack.c.b16 %v909, %v908
        %v913 = vpack.c.b16 %v911, %v910
        %v917 = vsel %vm650, %v898, 0
        %919 = vmatpush.bf16.msra.mxu0 0
        %920 = vmatpush.bf16.msra.mxu0 0
        %921 = vmatpush.bf16.msra.mxu0 0
        %922 = vmatpush.bf16.msra.mxu0 0
        %923 = vmatpush.bf16.msra.mxu0 0
        %924 = vmatpush.bf16.msra.mxu0 0
        %925 = vmatpush.bf16.msra.mxu0 %v913
        %926 = vmatpush.bf16.msra.mxu0 %v912
        %927 = vmatmul.bf16.gmra.mxu0 %v917
        %v928 = vpop.f32.mrf.mxu0
        %v929 = vadd.f32 0.0, %v928
        %v930 = vpop.f32.mrf.mxu0
        %v931 = vadd.f32 0.0, %v930
        %932 = vdwg.mxu0
        %v937 = vunpack.c.l.b16 %v894
        %v938 = vunpack.c.l.b16 %v895
        %v939 = vunpack.c.l.b16 %v896
        %v940 = vunpack.c.l.b16 %v897
        %v941 = vpack.c.b16 %v938, %v937
        %v942 = vpack.c.b16 %v940, %v939
        %v946 = vsel %vm650, %v893, 0
        %948 = vmatpush.bf16.msra.mxu0 0
        %949 = vmatpush.bf16.msra.mxu0 0
        %950 = vmatpush.bf16.msra.mxu0 0
        %951 = vmatpush.bf16.msra.mxu0 0
        %952 = vmatpush.bf16.msra.mxu0 0
        %953 = vmatpush.bf16.msra.mxu0 0
        %954 = vmatpush.bf16.msra.mxu0 %v942
        %955 = vmatpush.bf16.msra.mxu0 %v941
        %956 = vmatmul.bf16.gmra.mxu0 %v946
        %v957 = vpop.f32.mrf.mxu0
        %v958 = vadd.f32 %v929, %v957
        %v959 = vpop.f32.mrf.mxu0
        %v960 = vadd.f32 %v931, %v959
        %961 = vdwg.mxu0
        %v962 = vld [vmem:[#allocation2 + $0xa] sm:$0xff]
        %v963 = vld [vmem:[#allocation2 + $0x12] sm:$0xff]
        %v964 = vpack.c.bf16 %v963, %v962
        %s965 = scalar_lea.vmem [#allocation14], 32
        %v966 = vld [vmem:[%s965] sm:$0xf]
        %v967 = vld [vmem:[%s965 + $0x4] sm:$0xf]
        %v968 = vld [vmem:[%s965 + $0x8] sm:$0xf]
        %v969 = vld [vmem:[%s965 + $0xc] sm:$0xf]
        %v974 = vunpack.c.l.b16 %v966
        %v975 = vunpack.c.l.b16 %v967
        %v976 = vunpack.c.l.b16 %v968
        %v977 = vunpack.c.l.b16 %v969
        %v978 = vpack.c.b16 %v975, %v974
        %v979 = vpack.c.b16 %v977, %v976
        %v983 = vsel %vm650, %v964, 0
        %985 = vmatpush.bf16.msra.mxu0 0
        %986 = vmatpush.bf16.msra.mxu0 0
        %987 = vmatpush.bf16.msra.mxu0 0
        %988 = vmatpush.bf16.msra.mxu0 0
        %989 = vmatpush.bf16.msra.mxu0 0
        %990 = vmatpush.bf16.msra.mxu0 0
        %991 = vmatpush.bf16.msra.mxu0 %v979
        %992 = vmatpush.bf16.msra.mxu0 %v978
        %993 = vmatmul.bf16.gmra.mxu0 %v983
        %v994 = vpop.f32.mrf.mxu0
        %v995 = vadd.f32 0.0, %v994
        %v996 = vpop.f32.mrf.mxu0
        %v997 = vadd.f32 0.0, %v996
        %998 = vdwg.mxu0
        %v999 = vadd.f32 %v958, %v995
        %v1000 = vadd.f32 %v960, %v997
        %v1001 = vld [vmem:[#allocation15] sm:$0x1]
        %v1003 = vperm.slane %v1001, 0
        %v1005 = vadd.f32 %v999, %v1003
        %v1006 = vadd.f32 %v1000, %v1003
        %v1007 = vmax.f32 %v1005, 0.0
        %v1008 = vmax.f32 %v1006, 0.0
        %1009 = vst.msk [vmem:[#allocation2 + $0x8] sm:$0xff] %vm650, %v1007
        %1010 = vst.msk [vmem:[#allocation2 + $0x10] sm:$0xff] %vm650, %v1008
        %v1011 = vld [vmem:[#allocation2 + $0x6] sm:$0xff]
        %v1012 = vld [vmem:[#allocation2 + $0xe] sm:$0xff]
        %v1013 = vpack.c.bf16 %v1012, %v1011
        %v1014 = vld [vmem:[%s9] sm:$0xf]
        %v1015 = vld [vmem:[%s9 + $0x4] sm:$0xf]
        %v1016 = vld [vmem:[%s9 + $0x8] sm:$0xf]
        %v1017 = vld [vmem:[%s9 + $0xc] sm:$0xf]
        %v1018 = vpack.c.bf16 %v1008, %v1007
        %s1019 = scalar_lea.vmem %s9, 16
        %v1020 = vld [vmem:[%s1019] sm:$0xf]
        %v1021 = vld [vmem:[%s1019 + $0x4] sm:$0xf]
        %v1022 = vld [vmem:[%s1019 + $0x8] sm:$0xf]
        %v1023 = vld [vmem:[%s1019 + $0xc] sm:$0xf]
        %v1028 = vunpack.c.l.b16 %v1020
        %v1029 = vunpack.c.l.b16 %v1021
        %v1030 = vunpack.c.l.b16 %v1022
        %v1031 = vunpack.c.l.b16 %v1023
        %v1032 = vpack.c.b16 %v1029, %v1028
        %v1033 = vpack.c.b16 %v1031, %v1030
        %v1037 = vsel %vm650, %v1018, 0
        %1039 = vmatpush.bf16.msra.mxu0 0
        %1040 = vmatpush.bf16.msra.mxu0 0
        %1041 = vmatpush.bf16.msra.mxu0 0
        %1042 = vmatpush.bf16.msra.mxu0 0
        %1043 = vmatpush.bf16.msra.mxu0 0
        %1044 = vmatpush.bf16.msra.mxu0 0
        %1045 = vmatpush.bf16.msra.mxu0 %v1033
        %1046 = vmatpush.bf16.msra.mxu0 %v1032
        %1047 = vmatmul.bf16.gmra.mxu0 %v1037
        %v1048 = vpop.f32.mrf.mxu0
        %v1049 = vadd.f32 0.0, %v1048
        %v1050 = vpop.f32.mrf.mxu0
        %v1051 = vadd.f32 0.0, %v1050
        %1052 = vdwg.mxu0
        %v1057 = vunpack.c.l.b16 %v1014
        %v1058 = vunpack.c.l.b16 %v1015
        %v1059 = vunpack.c.l.b16 %v1016
        %v1060 = vunpack.c.l.b16 %v1017
        %v1061 = vpack.c.b16 %v1058, %v1057
        %v1062 = vpack.c.b16 %v1060, %v1059
        %v1066 = vsel %vm650, %v1013, 0
        %1068 = vmatpush.bf16.msra.mxu0 0
        %1069 = vmatpush.bf16.msra.mxu0 0
        %1070 = vmatpush.bf16.msra.mxu0 0
        %1071 = vmatpush.bf16.msra.mxu0 0
        %1072 = vmatpush.bf16.msra.mxu0 0
        %1073 = vmatpush.bf16.msra.mxu0 0
        %1074 = vmatpush.bf16.msra.mxu0 %v1062
        %1075 = vmatpush.bf16.msra.mxu0 %v1061
        %1076 = vmatmul.bf16.gmra.mxu0 %v1066
        %v1077 = vpop.f32.mrf.mxu0
        %v1078 = vadd.f32 %v1049, %v1077
        %v1079 = vpop.f32.mrf.mxu0
        %v1080 = vadd.f32 %v1051, %v1079
        %1081 = vdwg.mxu0
        %v1082 = vld [vmem:[#allocation2 + $0xa] sm:$0xff]
        %v1083 = vld [vmem:[#allocation2 + $0x12] sm:$0xff]
        %v1084 = vpack.c.bf16 %v1083, %v1082
        %s1085 = scalar_lea.vmem %s9, 32
        %v1086 = vld [vmem:[%s1085] sm:$0xf]
        %v1087 = vld [vmem:[%s1085 + $0x4] sm:$0xf]
        %v1088 = vld [vmem:[%s1085 + $0x8] sm:$0xf]
        %v1089 = vld [vmem:[%s1085 + $0xc] sm:$0xf]
        %v1094 = vunpack.c.l.b16 %v1086
        %v1095 = vunpack.c.l.b16 %v1087
        %v1096 = vunpack.c.l.b16 %v1088
        %v1097 = vunpack.c.l.b16 %v1089
        %v1098 = vpack.c.b16 %v1095, %v1094
        %v1099 = vpack.c.b16 %v1097, %v1096
        %v1103 = vsel %vm650, %v1084, 0
        %1105 = vmatpush.bf16.msra.mxu0 0
        %1106 = vmatpush.bf16.msra.mxu0 0
        %1107 = vmatpush.bf16.msra.mxu0 0
        %1108 = vmatpush.bf16.msra.mxu0 0
        %1109 = vmatpush.bf16.msra.mxu0 0
        %1110 = vmatpush.bf16.msra.mxu0 0
        %1111 = vmatpush.bf16.msra.mxu0 %v1099
        %1112 = vmatpush.bf16.msra.mxu0 %v1098
        %1113 = vmatmul.bf16.gmra.mxu0 %v1103
        %v1114 = vpop.f32.mrf.mxu0
        %v1115 = vadd.f32 0.0, %v1114
        %v1116 = vpop.f32.mrf.mxu0
        %v1117 = vadd.f32 0.0, %v1116
        %1118 = vdwg.mxu0
        %v1119 = vadd.f32 %v1078, %v1115
        %v1120 = vadd.f32 %v1080, %v1117
        %v1121 = vld [vmem:[%s10] sm:$0x1]
        %v1123 = vperm.slane %v1121, 0
        %v1125 = vadd.f32 %v1119, %v1123
        %v1126 = vadd.f32 %v1120, %v1123
        %v1127 = vmax.f32 %v1125, 0.0
        %v1128 = vmax.f32 %v1126, 0.0
        %v1129 = vadd.f32 %v887, %v1127
        %v1130 = vadd.f32 %v888, %v1128
        %v1131 = vmax.f32 %v1129, 0.0
        %v1132 = vmax.f32 %v1130, 0.0
        %v1133 = vadd.f32 %v861, %v1127
        %v1134 = vadd.f32 %v862, %v1128
        %1135 = vst.msk [vmem:[#allocation2 + $0x8] sm:$0xff] %vm650, %v1131
        %1136 = vst.msk [vmem:[#allocation2 + $0x10] sm:$0xff] %vm650, %v1132
        %v1137 = vld [vmem:[#allocation2 + $0x4] sm:$0xff]
        %v1138 = vld [vmem:[#allocation2 + $0xc] sm:$0xff]
        %v1139 = vpack.c.bf16 %v1138, %v1137
        %v1140 = vld [vmem:[#allocation17] sm:$0xf]
        %v1141 = vld [vmem:[#allocation17 + $0x4] sm:$0xf]
        %v1142 = vld [vmem:[#allocation17 + $0x8] sm:$0xf]
        %v1143 = vld [vmem:[#allocation17 + $0xc] sm:$0xf]
        %v1144 = vpack.c.bf16 %v1132, %v1131
        %s1145 = scalar_lea.vmem [#allocation17], 16
        %v1146 = vld [vmem:[%s1145] sm:$0xf]
        %v1147 = vld [vmem:[%s1145 + $0x4] sm:$0xf]
        %v1148 = vld [vmem:[%s1145 + $0x8] sm:$0xf]
        %v1149 = vld [vmem:[%s1145 + $0xc] sm:$0xf]
        %v1154 = vunpack.c.l.b16 %v1146
        %v1155 = vunpack.c.l.b16 %v1147
        %v1156 = vunpack.c.l.b16 %v1148
        %v1157 = vunpack.c.l.b16 %v1149
        %v1158 = vpack.c.b16 %v1155, %v1154
        %v1159 = vpack.c.b16 %v1157, %v1156
        %v1163 = vsel %vm650, %v1144, 0
        %1165 = vmatpush.bf16.msra.mxu0 0
        %1166 = vmatpush.bf16.msra.mxu0 0
        %1167 = vmatpush.bf16.msra.mxu0 0
        %1168 = vmatpush.bf16.msra.mxu0 0
        %1169 = vmatpush.bf16.msra.mxu0 0
        %1170 = vmatpush.bf16.msra.mxu0 0
        %1171 = vmatpush.bf16.msra.mxu0 %v1159
        %1172 = vmatpush.bf16.msra.mxu0 %v1158
        %1173 = vmatmul.bf16.gmra.mxu0 %v1163
        %v1174 = vpop.f32.mrf.mxu0
        %v1175 = vadd.f32 0.0, %v1174
        %v1176 = vpop.f32.mrf.mxu0
        %v1177 = vadd.f32 0.0, %v1176
        %1178 = vdwg.mxu0
        %v1183 = vunpack.c.l.b16 %v1140
        %v1184 = vunpack.c.l.b16 %v1141
        %v1185 = vunpack.c.l.b16 %v1142
        %v1186 = vunpack.c.l.b16 %v1143
        %v1187 = vpack.c.b16 %v1184, %v1183
        %v1188 = vpack.c.b16 %v1186, %v1185
        %v1192 = vsel %vm650, %v1139, 0
        %1194 = vmatpush.bf16.msra.mxu0 0
        %1195 = vmatpush.bf16.msra.mxu0 0
        %1196 = vmatpush.bf16.msra.mxu0 0
        %1197 = vmatpush.bf16.msra.mxu0 0
        %1198 = vmatpush.bf16.msra.mxu0 0
        %1199 = vmatpush.bf16.msra.mxu0 0
        %1200 = vmatpush.bf16.msra.mxu0 %v1188
        %1201 = vmatpush.bf16.msra.mxu0 %v1187
        %1202 = vmatmul.bf16.gmra.mxu0 %v1192
        %v1203 = vpop.f32.mrf.mxu0
        %v1204 = vadd.f32 %v1175, %v1203
        %v1205 = vpop.f32.mrf.mxu0
        %v1206 = vadd.f32 %v1177, %v1205
        %1207 = vdwg.mxu0
        %v1208 = vld [vmem:[#allocation2 + $0xc] sm:$0xff]
        %v1209 = vld [vmem:[#allocation2 + $0x14] sm:$0xff]
        %v1210 = vpack.c.bf16 %v1209, %v1208
        %s1211 = scalar_lea.vmem [#allocation17], 32
        %v1212 = vld [vmem:[%s1211] sm:$0xf]
        %v1213 = vld [vmem:[%s1211 + $0x4] sm:$0xf]
        %v1214 = vld [vmem:[%s1211 + $0x8] sm:$0xf]
        %v1215 = vld [vmem:[%s1211 + $0xc] sm:$0xf]
        %v1220 = vunpack.c.l.b16 %v1212
        %v1221 = vunpack.c.l.b16 %v1213
        %v1222 = vunpack.c.l.b16 %v1214
        %v1223 = vunpack.c.l.b16 %v1215
        %v1224 = vpack.c.b16 %v1221, %v1220
        %v1225 = vpack.c.b16 %v1223, %v1222
        %v1229 = vsel %vm650, %v1210, 0
        %1231 = vmatpush.bf16.msra.mxu0 0
        %1232 = vmatpush.bf16.msra.mxu0 0
        %1233 = vmatpush.bf16.msra.mxu0 0
        %1234 = vmatpush.bf16.msra.mxu0 0
        %1235 = vmatpush.bf16.msra.mxu0 0
        %1236 = vmatpush.bf16.msra.mxu0 0
        %1237 = vmatpush.bf16.msra.mxu0 %v1225
        %1238 = vmatpush.bf16.msra.mxu0 %v1224
        %1239 = vmatmul.bf16.gmra.mxu0 %v1229
        %v1240 = vpop.f32.mrf.mxu0
        %v1241 = vadd.f32 0.0, %v1240
        %v1242 = vpop.f32.mrf.mxu0
        %v1243 = vadd.f32 0.0, %v1242
        %1244 = vdwg.mxu0
        %v1245 = vadd.f32 %v1204, %v1241
        %v1246 = vadd.f32 %v1206, %v1243
        %v1247 = vld [vmem:[%s12] sm:$0x1]
        %v1249 = vperm.slane %v1247, 0
        %v1251 = vadd.f32 %v1245, %v1249
        %v1252 = vadd.f32 %v1246, %v1249
        %v1253 = vmax.f32 %v1251, 0.0
        %v1254 = vmax.f32 %v1252, 0.0
        %1255 = vst.msk [vmem:[#allocation2 + $0x8] sm:$0xff] %vm650, %v1253
        %1256 = vst.msk [vmem:[#allocation2 + $0x10] sm:$0xff] %vm650, %v1254
        %v1257 = vld [vmem:[#allocation2 + $0x4] sm:$0xff]
        %v1258 = vld [vmem:[#allocation2 + $0xc] sm:$0xff]
        %v1259 = vpack.c.bf16 %v1258, %v1257
        %v1260 = vld [vmem:[#allocation18] sm:$0xf]
        %v1261 = vld [vmem:[#allocation18 + $0x4] sm:$0xf]
        %v1262 = vld [vmem:[#allocation18 + $0x8] sm:$0xf]
        %v1263 = vld [vmem:[#allocation18 + $0xc] sm:$0xf]
        %v1264 = vpack.c.bf16 %v1254, %v1253
        %s1265 = scalar_lea.vmem [#allocation18], 16
        %v1266 = vld [vmem:[%s1265] sm:$0xf]
        %v1267 = vld [vmem:[%s1265 + $0x4] sm:$0xf]
        %v1268 = vld [vmem:[%s1265 + $0x8] sm:$0xf]
        %v1269 = vld [vmem:[%s1265 + $0xc] sm:$0xf]
        %v1274 = vunpack.c.l.b16 %v1266
        %v1275 = vunpack.c.l.b16 %v1267
        %v1276 = vunpack.c.l.b16 %v1268
        %v1277 = vunpack.c.l.b16 %v1269
        %v1278 = vpack.c.b16 %v1275, %v1274
        %v1279 = vpack.c.b16 %v1277, %v1276
        %v1283 = vsel %vm650, %v1264, 0
        %1285 = vmatpush.bf16.msra.mxu0 0
        %1286 = vmatpush.bf16.msra.mxu0 0
        %1287 = vmatpush.bf16.msra.mxu0 0
        %1288 = vmatpush.bf16.msra.mxu0 0
        %1289 = vmatpush.bf16.msra.mxu0 0
        %1290 = vmatpush.bf16.msra.mxu0 0
        %1291 = vmatpush.bf16.msra.mxu0 %v1279
        %1292 = vmatpush.bf16.msra.mxu0 %v1278
        %1293 = vmatmul.bf16.gmra.mxu0 %v1283
        %v1294 = vpop.f32.mrf.mxu0
        %v1295 = vadd.f32 0.0, %v1294
        %v1296 = vpop.f32.mrf.mxu0
        %v1297 = vadd.f32 0.0, %v1296
        %1298 = vdwg.mxu0
        %v1303 = vunpack.c.l.b16 %v1260
        %v1304 = vunpack.c.l.b16 %v1261
        %v1305 = vunpack.c.l.b16 %v1262
        %v1306 = vunpack.c.l.b16 %v1263
        %v1307 = vpack.c.b16 %v1304, %v1303
        %v1308 = vpack.c.b16 %v1306, %v1305
        %v1312 = vsel %vm650, %v1259, 0
        %1314 = vmatpush.bf16.msra.mxu0 0
        %1315 = vmatpush.bf16.msra.mxu0 0
        %1316 = vmatpush.bf16.msra.mxu0 0
        %1317 = vmatpush.bf16.msra.mxu0 0
        %1318 = vmatpush.bf16.msra.mxu0 0
        %1319 = vmatpush.bf16.msra.mxu0 0
        %1320 = vmatpush.bf16.msra.mxu0 %v1308
        %1321 = vmatpush.bf16.msra.mxu0 %v1307
        %1322 = vmatmul.bf16.gmra.mxu0 %v1312
        %v1323 = vpop.f32.mrf.mxu0
        %v1324 = vadd.f32 %v1295, %v1323
        %v1325 = vpop.f32.mrf.mxu0
        %v1326 = vadd.f32 %v1297, %v1325
        %1327 = vdwg.mxu0
        %v1328 = vld [vmem:[#allocation2 + $0xc] sm:$0xff]
        %v1329 = vld [vmem:[#allocation2 + $0x14] sm:$0xff]
        %v1330 = vpack.c.bf16 %v1329, %v1328
        %s1331 = scalar_lea.vmem [#allocation18], 32
        %v1332 = vld [vmem:[%s1331] sm:$0xf]
        %v1333 = vld [vmem:[%s1331 + $0x4] sm:$0xf]
        %v1334 = vld [vmem:[%s1331 + $0x8] sm:$0xf]
        %v1335 = vld [vmem:[%s1331 + $0xc] sm:$0xf]
        %v1340 = vunpack.c.l.b16 %v1332
        %v1341 = vunpack.c.l.b16 %v1333
        %v1342 = vunpack.c.l.b16 %v1334
        %v1343 = vunpack.c.l.b16 %v1335
        %v1344 = vpack.c.b16 %v1341, %v1340
        %v1345 = vpack.c.b16 %v1343, %v1342
        %v1349 = vsel %vm650, %v1330, 0
        %1351 = vmatpush.bf16.msra.mxu0 0
        %1352 = vmatpush.bf16.msra.mxu0 0
        %1353 = vmatpush.bf16.msra.mxu0 0
        %1354 = vmatpush.bf16.msra.mxu0 0
        %1355 = vmatpush.bf16.msra.mxu0 0
        %1356 = vmatpush.bf16.msra.mxu0 0
        %1357 = vmatpush.bf16.msra.mxu0 %v1345
        %1358 = vmatpush.bf16.msra.mxu0 %v1344
        %1359 = vmatmul.bf16.gmra.mxu0 %v1349
        %v1360 = vpop.f32.mrf.mxu0
        %v1361 = vadd.f32 0.0, %v1360
        %v1362 = vpop.f32.mrf.mxu0
        %v1363 = vadd.f32 0.0, %v1362
        %1364 = vdwg.mxu0
        %v1365 = vadd.f32 %v1324, %v1361
        %v1366 = vadd.f32 %v1326, %v1363
        %v1367 = vld [vmem:[%s14] sm:$0x1]
        %v1369 = vperm.slane %v1367, 0
        %v1371 = vadd.f32 %v1365, %v1369
        %v1372 = vadd.f32 %v1366, %v1369
        %v1373 = vmax.f32 %v1371, 0.0
        %v1374 = vmax.f32 %v1372, 0.0
        %v1375 = vadd.f32 %v1133, %v1373
        %v1376 = vadd.f32 %v1134, %v1374
        %1377 = vst.msk [vmem:[%s643] sm:$0xff] %vm650, %v1375
        %1378 = vst.msk [vmem:[%s643 + $0x8] sm:$0xff] %vm650, %v1376
        %s1379 = sand.u32 %s363, 1
        %s1380 = scalar_lea.sflag [#allocation5], %s1379
        %s1381 = sand.u32 %s363, 1
        %s1382 = smul.addr %s1381, 16
        %s1383 = scalar_lea.vmem [#allocation20], %s1382
        // Predicated region
        $region121: #{tpu_custom_call.1} parent=79 // pred_check
          %p1384 = pneg %p373
        $region122: #{tpu_custom_call.1} parent=79 // pred_check_branch
          %1386 = sbr.rel (%p1384) target = $region124
        $region123: #{tpu_custom_call.1} parent=79 // pred_region
          %1388 = vsyncadd %s1380, 0
          %s1389 = smul.addr %s35, 2
          %s1390 = smul.addr %s1389, 8
          %s1391 = scalar_lea.hbm %s15, %s1390
          %s1392 = sshll.u32 %s1383, 4
          %s1393 = int_to_ptr.vmem [resolvable:$true] %s1392
          %s1394 = sshll.u32 %s1391, 4
          %s1395 = int_to_ptr.hbm [resolvable:$true] %s1394
          %1400 = dma.vmem_to_hbm [thread:$0]  %s1393, 256, %s1395, %s1380, 128, 128, 8
        $region124: #{tpu_custom_call.1} parent=79 // pred_fallthru
          _
      $region80: #{tpu_custom_call.1} parent=5 // pred_fallthru
        _
      %p1401 = scmp.le.s32.totalorder 2, %s30
      // Predicated region
      $region125: #{tpu_custom_call.1} parent=5 // pred_check
        %p1402 = pneg %p1401
      $region126: #{tpu_custom_call.1} parent=5 // pred_check_branch
        %1404 = sbr.rel (%p1402) target = $region128
      $region127: #{tpu_custom_call.1} parent=5 // pred_region
        %s1405 = ssub.s32 %s30, 2
        // Predicated region
        $region129: #{tpu_custom_call.1} parent=127 // pred_check
          %p1406 = pneg %p379
        $region130: #{tpu_custom_call.1} parent=127 // pred_check_branch
          %1408 = sbr.rel (%p1406) target = $region132
        $region131: #{tpu_custom_call.1} parent=127 // pred_region
          %s1409 = sand.u32 %s364, 1
          %s1410 = scalar_lea.sflag [#allocation5], %s1409
          %s1411 = sand.u32 %s364, 1
          %s1412 = smul.addr %s1411, 16
          %s1413 = scalar_lea.vmem [#allocation20], %s1412
          %1415 = dma.done %s1410, 256
        $region132: #{tpu_custom_call.1} parent=127 // pred_fallthru
          _
      $region128: #{tpu_custom_call.1} parent=5 // pred_fallthru
        _
    $region6: #{tpu_custom_call.1} parent=1 // loop_footer
      %s34 = sadd.s32 1, %s30
    $region7: #{tpu_custom_call.1} parent=1 // loop_footer_branch
      %29 = sbr.rel target = $region3
    $region8: #{tpu_custom_call.1} parent=1 // loop_exit
      _
    %1416 = vsyncpa [#allocation4], 1
    %s1417 = scalar_lea.sflag [#allocation4], 1
    %1418 = vsyncpa %s1417, 1
    %1419 = vsyncpa [#allocation7], 1
    %1420 = vsyncpa [#allocation10], 1
    %1421 = vsyncpa [#allocation13], 1
    %1422 = vsyncpa [#allocation16], 1
    %1423 = vsyncpa [#allocation19], 1
    %1424 = vsyncpa [#allocation5], 1
    %s1425 = scalar_lea.sflag [#allocation5], 1
    %1426 = vsyncpa %s1425, 1

</llo_original>
